<compile_context>
chip_gen: v7x
topology: tpu7x:2x2x1
jax: 0.10.0
libtpu: 0.0.40
codegen_flags: <defaults>
</compile_context>

<pallas_src>
import jax
import jax.numpy as jnp
from jax.experimental import pallas as pl
from jax.experimental.pallas import tpu as pltpu


def _round_up(x, m):
    return (x + m - 1) // m * m


# ----------------------------- fused Pallas kernel ---------------------------

def _fused_head_kernel(batch_ref, x_ref, fp_ref, wfp_ref, bfp_ref,
                       w1p_ref, w1f_ref, b1_ref, w2_ref, b2_ref,
                       inbetween_ref, pred_ref, pooled_acc):
    """Fused GNNGraphHead forward.

    grid = (num_node_tiles,)  -- the pooling reduction axis ("arbitrary").
    Each step scatter-adds one node tile into the f32 VMEM accumulator via a
    [G, TN] one-hot @ [TN, D] MXU matmul. The last step runs the fingerprint
    linear and the post-mp MLP (concat-free) and writes the packed outputs.
    """
    step = pl.program_id(0)

    @pl.when(step == 0)
    def _():
        pooled_acc[...] = jnp.zeros_like(pooled_acc)

    # ---- global_add_pool for this node tile (one-hot matmul, f32 accum) ----
    num_graphs = pooled_acc.shape[0]
    tn = x_ref.shape[0]
    gids = jax.lax.broadcasted_iota(jnp.int32, (num_graphs, tn), 0)    # [G, TN]
    onehot = (batch_ref[...] == gids).astype(jnp.float32).astype(jnp.bfloat16)
    pooled_acc[...] += jnp.dot(onehot, x_ref[...],
                               preferred_element_type=jnp.float32)

    # ---- finalize: fingerprint MLP + post-mp MLP, write packed outputs ----
    @pl.when(step == pl.num_programs(0) - 1)
    def _():
        d = pooled_acc.shape[1]
        pooled = pooled_acc[...]                                       # [G, D] f32

        fp_emb = jnp.dot(fp_ref[...], wfp_ref[...],
                         preferred_element_type=jnp.float32) + bfp_ref[...]

        # inbetween_embedding = concat([pooled, fp_emb], 1), written directly
        # into the output slab (graph_emb never materialized).
        inbetween_ref[:, :d] = pooled
        inbetween_ref[:, d:] = fp_emb

        # h = relu(graph_emb @ w1 + b1) with w1 pre-split -> no concat needed.
        h = jnp.dot(pooled.astype(jnp.bfloat16), w1p_ref[...],
                    preferred_element_type=jnp.float32)
        h = h + jnp.dot(fp_emb.astype(jnp.bfloat16), w1f_ref[...],
                        preferred_element_type=jnp.float32)
        h = jnp.maximum(h + b1_ref[...], 0.0)

        # pred = h @ w2 + b2; w2/b2 are zero-padded to 128 output lanes in the
        # wrapper, so this is a single lane-dense store.
        pred_ref[...] = jnp.dot(h.astype(jnp.bfloat16), w2_ref[...],
                                preferred_element_type=jnp.float32) + b2_ref[...]


# --------------------------------- wrapper -----------------------------------

def gnn_graph_head_forward(params, x, batch_idx, fp, y, num_graphs,
                           node_tile=512):
    n, d = x.shape
    g, fp_dim = fp.shape
    assert g == num_graphs
    dim_out = params["w2"].shape[1]

    # ---- one-time layout / dtype plumbing (outside the kernel) ----
    # Node tile: modest (<=512, keeps the one-hot VALU work bounded) and either
    # a multiple of 128 or the full (padded) node count.
    tn = min(node_tile, _round_up(n, 8))
    n_pad = _round_up(n, tn)
    # Padded nodes get graph id == num_graphs -> dropped by the one-hot.
    batch2d = jnp.full((1, n_pad), num_graphs, jnp.int32)
    batch2d = batch2d.at[0, :n].set(batch_idx.astype(jnp.int32))
    x_pad = jnp.zeros((n_pad, d), jnp.bfloat16).at[:n, :].set(
        x.astype(jnp.bfloat16))

    fp_bf = fp.astype(jnp.bfloat16)
    w_fp = params["w_fp"].astype(jnp.bfloat16)
    b_fp = params["b_fp"].astype(jnp.float32).reshape(1, d)
    # Split w1 -> concat-free first post-mp layer.
    w1 = params["w1"].astype(jnp.bfloat16)
    w1_pool, w1_fp = w1[:d, :], w1[d:, :]
    b1 = params["b1"].astype(jnp.float32).reshape(1, 2 * d)
    # Zero-pad w2 / b2 to a 128-lane output slab -> lane-dense pred store.
    pred_pad = _round_up(dim_out, 128)
    w2 = jnp.zeros((2 * d, pred_pad), jnp.bfloat16).at[:, :dim_out].set(
        params["w2"].astype(jnp.bfloat16))
    b2 = jnp.zeros((1, pred_pad), jnp.float32).at[:, :dim_out].set(
        params["b2"].astype(jnp.float32).reshape(1, dim_out))

    num_tiles = n_pad // tn
    const = lambda s: (0, 0)

    inbetween, pred_padded = pl.pallas_call(
        _fused_head_kernel,
        out_shape=(
            jax.ShapeDtypeStruct((g, 2 * d), jnp.float32),      # inbetween
            jax.ShapeDtypeStruct((g, pred_pad), jnp.float32),   # pred (padded)
        ),
        grid_spec=pltpu.PrefetchScalarGridSpec(
            num_scalar_prefetch=0,
            grid=(num_tiles,),
            in_specs=[
                pl.BlockSpec((1, tn), lambda s: (0, s)),        # graph ids
                pl.BlockSpec((tn, d), lambda s: (s, 0)),        # x node tile
                pl.BlockSpec((g, fp_dim), const),               # fp
                pl.BlockSpec((fp_dim, d), const),               # w_fp
                pl.BlockSpec((1, d), const),                    # b_fp
                pl.BlockSpec((d, 2 * d), const),                # w1_pool
                pl.BlockSpec((d, 2 * d), const),                # w1_fp
                pl.BlockSpec((1, 2 * d), const),                # b1
                pl.BlockSpec((2 * d, pred_pad), const),         # w2 (padded)
                pl.BlockSpec((1, pred_pad), const),             # b2 (padded)
            ],
            out_specs=[
                pl.BlockSpec((g, 2 * d), const),
                pl.BlockSpec((g, pred_pad), const),
            ],
            scratch_shapes=[pltpu.VMEM((g, d), jnp.float32)],   # pooled accum
        ),
        compiler_params=pltpu.CompilerParams(
            dimension_semantics=("arbitrary",)),                # reduction axis
    )(batch2d, x_pad, fp_bf, w_fp, b_fp, w1_pool, w1_fp, b1, w2, b2)

    pred = pred_padded[:, :dim_out]
    return pred, y, inbetween


# -------------------------------- reference ----------------------------------

def reference_forward(params, x, batch_idx, fp, y, num_graphs):
    """Pure-JAX reference emulating the kernel's numerics: bf16-rounded inputs
    and weights, f32 accumulation (Precision.HIGHEST)."""
    r = lambda a: a.astype(jnp.bfloat16).astype(jnp.float32)
    hi = jax.lax.Precision.HIGHEST
    pooled = jax.ops.segment_sum(r(x), batch_idx, num_segments=num_graphs)
    fp_emb = jnp.dot(r(fp), r(params["w_fp"]), precision=hi) + params["b_fp"]
    graph_emb = jnp.concatenate([pooled, fp_emb], axis=1)
    h = jnp.maximum(
        jnp.dot(r(graph_emb), r(params["w1"]), precision=hi) + params["b1"], 0.0)
    pred = jnp.dot(r(h), r(params["w2"]), precision=hi) + params["b2"]
    return pred, y, graph_emb


# ----------------------------------- main -------------------------------------

if __name__ == "__main__":
    DIM_IN = 32          # node feature dim
    DIM_OUT = 8          # prediction dim
    FP_DIM = 2048        # fingerprint input dim (>2000 -> plain-tensor MLP branch)
    N_NODES = 64
    N_GRAPHS = 8         # multiple of 8 (sublane-friendly M for the matmuls)

    key = jax.random.PRNGKey(0)
    k_x, k_fp, k_y, k_wfp, k_bfp, k_w1, k_b1, k_w2, k_b2 = jax.random.split(key, 9)

    x = jax.random.normal(k_x, (N_NODES, DIM_IN), dtype=jnp.float32)
    # 8 consecutive nodes per graph
    batch_idx = jnp.repeat(jnp.arange(N_GRAPHS, dtype=jnp.int32),
                           N_NODES // N_GRAPHS)
    fp = jax.random.normal(k_fp, (N_GRAPHS, FP_DIM), dtype=jnp.float32)
    y = jax.random.normal(k_y, (N_GRAPHS, DIM_OUT), dtype=jnp.float32)

    params = {
        # fingerprint MLP (num_layers=1): Linear(2048 -> DIM_IN, bias=True)
        "w_fp": 0.02 * jax.random.normal(k_wfp, (FP_DIM, DIM_IN), jnp.float32),
        "b_fp": 0.02 * jax.random.normal(k_bfp, (1, DIM_IN), jnp.float32),
        # post-mp MLP layer 1: Linear(2*DIM_IN -> 2*DIM_IN, bias=True) + ReLU
        "w1": 0.1 * jax.random.normal(k_w1, (2 * DIM_IN, 2 * DIM_IN), jnp.float32),
        "b1": 0.1 * jax.random.normal(k_b1, (1, 2 * DIM_IN), jnp.float32),
        # post-mp MLP layer 2: Linear(2*DIM_IN -> DIM_OUT, bias=True)
        "w2": 0.1 * jax.random.normal(k_w2, (2 * DIM_IN, DIM_OUT), jnp.float32),
        "b2": 0.1 * jax.random.normal(k_b2, (1, DIM_OUT), jnp.float32),
    }

    pred, label, inbetween = gnn_graph_head_forward(
        params, x, batch_idx, fp, y, N_GRAPHS)
    jax.block_until_ready((pred, label, inbetween))

    pred_ref, label_ref, inbetween_ref = reference_forward(
        params, x, batch_idx, fp, y, N_GRAPHS)
    assert pred.shape == (N_GRAPHS, DIM_OUT)
    assert inbetween.shape == (N_GRAPHS, 2 * DIM_IN)
    assert jnp.allclose(inbetween, inbetween_ref, atol=1e-2, rtol=1e-2)
    assert jnp.allclose(pred, pred_ref, atol=1e-2, rtol=1e-2)
    assert jnp.array_equal(label, label_ref)

    print("KERNEL_OK")
</pallas_src>

<mosaic_0001>
module attributes {stable_mosaic.version = 11 : i64} {
  func.func @_fused_head_kernel(%arg0: i32, %arg1: memref<1x64xi32, #tpu.memory_space<vmem>>, %arg2: memref<64x32xbf16, #tpu.memory_space<vmem>>, %arg3: memref<8x2048xbf16, #tpu.memory_space<vmem>>, %arg4: memref<2048x32xbf16, #tpu.memory_space<vmem>>, %arg5: memref<1x32xf32, #tpu.memory_space<vmem>>, %arg6: memref<32x64xbf16, #tpu.memory_space<vmem>>, %arg7: memref<32x64xbf16, #tpu.memory_space<vmem>>, %arg8: memref<1x64xf32, #tpu.memory_space<vmem>>, %arg9: memref<64x128xbf16, #tpu.memory_space<vmem>>, %arg10: memref<1x128xf32, #tpu.memory_space<vmem>>, %arg11: memref<8x64xf32, #tpu.memory_space<vmem>>, %arg12: memref<8x128xf32, #tpu.memory_space<vmem>>, %arg13: memref<8x32xf32, #tpu.memory_space<vmem>>) attributes {dimension_semantics = [#tpu.dimension_semantics<arbitrary>], iteration_bounds = array<i64: 1>, scalar_prefetch = 0 : i64, scratch_operands = 1 : i64, tpu.core_type = #tpu.core_type<tc>, window_params = [{transform_indices = @transform_0, window_bounds = array<i64: 1, 64>}, {transform_indices = @transform_1, window_bounds = array<i64: 64, 32>}, {pipeline_mode = #tpu.pipeline_mode<synchronous>, transform_indices = @transform_2, window_bounds = array<i64: 8, 2048>}, {pipeline_mode = #tpu.pipeline_mode<synchronous>, transform_indices = @transform_3, window_bounds = array<i64: 2048, 32>}, {pipeline_mode = #tpu.pipeline_mode<synchronous>, transform_indices = @transform_4, window_bounds = array<i64: 1, 32>}, {pipeline_mode = #tpu.pipeline_mode<synchronous>, transform_indices = @transform_5, window_bounds = array<i64: 32, 64>}, {pipeline_mode = #tpu.pipeline_mode<synchronous>, transform_indices = @transform_6, window_bounds = array<i64: 32, 64>}, {pipeline_mode = #tpu.pipeline_mode<synchronous>, transform_indices = @transform_7, window_bounds = array<i64: 1, 64>}, {pipeline_mode = #tpu.pipeline_mode<synchronous>, transform_indices = @transform_8, window_bounds = array<i64: 64, 128>}, {pipeline_mode = #tpu.pipeline_mode<synchronous>, transform_indices = @transform_9, window_bounds = array<i64: 1, 128>}, {pipeline_mode = #tpu.pipeline_mode<synchronous>, transform_indices = @transform_10, window_bounds = array<i64: 8, 64>}, {pipeline_mode = #tpu.pipeline_mode<synchronous>, transform_indices = @transform_11, window_bounds = array<i64: 8, 128>}]} {
    %c0_i32 = arith.constant 0 : i32
    %0 = arith.cmpi eq, %arg0, %c0_i32 : i32
    %1 = arith.extui %0 : i1 to i32
    %c0_i32_0 = arith.constant 0 : i32
    %2 = arith.cmpi ne, %1, %c0_i32_0 : i32
    scf.if %2 {
      %cst_10 = arith.constant 0.000000e+00 : f32
      %18 = vector.broadcast %cst_10 : f32 to vector<8x32xf32>
      %c0_11 = arith.constant 0 : index
      %c0_12 = arith.constant 0 : index
      %19 = vector.load %arg13[%c0_11, %c0_12] : memref<8x32xf32, #tpu.memory_space<vmem>>, vector<8x32xf32>
      tpu.vector_store %arg13[%c0_11, %c0_12], %18 {strides = array<i32>} : memref<8x32xf32, #tpu.memory_space<vmem>>, vector<8x32xf32>,
    } else {
    }
    %3 = tpu.iota {dimensions = array<i32: 0>} : vector<8x64xi32>
    %c0 = arith.constant 0 : index
    %c0_1 = arith.constant 0 : index
    %4 = vector.load %arg1[%c0, %c0_1] : memref<1x64xi32, #tpu.memory_space<vmem>>, vector<1x64xi32>
    %5 = vector.broadcast %4 : vector<1x64xi32> to vector<8x64xi32>
    %6 = arith.cmpi eq, %5, %3 : vector<8x64xi32>
    %7 = arith.extui %6 : vector<8x64xi1> to vector<8x64xi32>
    %8 = arith.sitofp %7 : vector<8x64xi32> to vector<8x64xf32>
    %9 = arith.truncf %8 : vector<8x64xf32> to vector<8x64xbf16>
    %c0_2 = arith.constant 0 : index
    %c0_3 = arith.constant 0 : index
    %10 = vector.load %arg13[%c0_2, %c0_3] : memref<8x32xf32, #tpu.memory_space<vmem>>, vector<8x32xf32>
    %c0_4 = arith.constant 0 : index
    %c0_5 = arith.constant 0 : index
    %11 = vector.load %arg2[%c0_4, %c0_5] : memref<64x32xbf16, #tpu.memory_space<vmem>>, vector<64x32xbf16>
    %cst = arith.constant dense<0.000000e+00> : vector<8x32xf32>
    %12 = tpu.matmul %9, %11, %cst {dimension_numbers = #tpu.dot_dimension_numbers<[1], [0], [0], [1], [0, 0, 1, 1], [], []>} : vector<8x64xbf16>, vector<64x32xbf16>, vector<8x32xf32> -> vector<8x32xf32>
    %13 = arith.addf %10, %12 : vector<8x32xf32>
    %c0_6 = arith.constant 0 : index
    %c0_7 = arith.constant 0 : index
    %14 = vector.load %arg13[%c0_6, %c0_7] : memref<8x32xf32, #tpu.memory_space<vmem>>, vector<8x32xf32>
    tpu.vector_store %arg13[%c0_6, %c0_7], %13 {strides = array<i32>} : memref<8x32xf32, #tpu.memory_space<vmem>>, vector<8x32xf32>,
    %c0_i32_8 = arith.constant 0 : i32
    %15 = arith.cmpi eq, %arg0, %c0_i32_8 : i32
    %16 = arith.extui %15 : i1 to i32
    %c0_i32_9 = arith.constant 0 : i32
    %17 = arith.cmpi ne, %16, %c0_i32_9 : i32
    scf.if %17 {
      %c0_10 = arith.constant 0 : index
      %c0_11 = arith.constant 0 : index
      %18 = vector.load %arg13[%c0_10, %c0_11] : memref<8x32xf32, #tpu.memory_space<vmem>>, vector<8x32xf32>
      %c0_12 = arith.constant 0 : index
      %c0_13 = arith.constant 0 : index
      %19 = vector.load %arg3[%c0_12, %c0_13] : memref<8x2048xbf16, #tpu.memory_space<vmem>>, vector<8x2048xbf16>
      %c0_14 = arith.constant 0 : index
      %c0_15 = arith.constant 0 : index
      %20 = vector.load %arg4[%c0_14, %c0_15] : memref<2048x32xbf16, #tpu.memory_space<vmem>>, vector<2048x32xbf16>
      %cst_16 = arith.constant dense<0.000000e+00> : vector<8x32xf32>
      %21 = tpu.matmul %19, %20, %cst_16 {dimension_numbers = #tpu.dot_dimension_numbers<[1], [0], [0], [1], [0, 0, 1, 1], [], []>} : vector<8x2048xbf16>, vector<2048x32xbf16>, vector<8x32xf32> -> vector<8x32xf32>
      %c0_17 = arith.constant 0 : index
      %c0_18 = arith.constant 0 : index
      %22 = vector.load %arg5[%c0_17, %c0_18] : memref<1x32xf32, #tpu.memory_space<vmem>>, vector<1x32xf32>
      %23 = vector.broadcast %22 : vector<1x32xf32> to vector<8x32xf32>
      %24 = arith.addf %21, %23 : vector<8x32xf32>
      %c0_19 = arith.constant 0 : index
      %c0_20 = arith.constant 0 : index
      %25 = vector.load %arg11[%c0_19, %c0_20] : memref<8x64xf32, #tpu.memory_space<vmem>>, vector<8x32xf32>
      tpu.vector_store %arg11[%c0_19, %c0_20], %18 {strides = array<i32>} : memref<8x64xf32, #tpu.memory_space<vmem>>, vector<8x32xf32>,
      %c0_21 = arith.constant 0 : index
      %c32 = arith.constant 32 : index
      %26 = vector.load %arg11[%c0_21, %c32] : memref<8x64xf32, #tpu.memory_space<vmem>>, vector<8x32xf32>
      tpu.vector_store %arg11[%c0_21, %c32], %24 {strides = array<i32>} : memref<8x64xf32, #tpu.memory_space<vmem>>, vector<8x32xf32>,
      %27 = arith.truncf %18 : vector<8x32xf32> to vector<8x32xbf16>
      %c0_22 = arith.constant 0 : index
      %c0_23 = arith.constant 0 : index
      %28 = vector.load %arg6[%c0_22, %c0_23] : memref<32x64xbf16, #tpu.memory_space<vmem>>, vector<32x64xbf16>
      %cst_24 = arith.constant dense<0.000000e+00> : vector<8x64xf32>
      %29 = tpu.matmul %27, %28, %cst_24 {dimension_numbers = #tpu.dot_dimension_numbers<[1], [0], [0], [1], [0, 0, 1, 1], [], []>} : vector<8x32xbf16>, vector<32x64xbf16>, vector<8x64xf32> -> vector<8x64xf32>
      %30 = arith.truncf %24 : vector<8x32xf32> to vector<8x32xbf16>
      %c0_25 = arith.constant 0 : index
      %c0_26 = arith.constant 0 : index
      %31 = vector.load %arg7[%c0_25, %c0_26] : memref<32x64xbf16, #tpu.memory_space<vmem>>, vector<32x64xbf16>
      %cst_27 = arith.constant dense<0.000000e+00> : vector<8x64xf32>
      %32 = tpu.matmul %30, %31, %cst_27 {dimension_numbers = #tpu.dot_dimension_numbers<[1], [0], [0], [1], [0, 0, 1, 1], [], []>} : vector<8x32xbf16>, vector<32x64xbf16>, vector<8x64xf32> -> vector<8x64xf32>
      %33 = arith.addf %29, %32 : vector<8x64xf32>
      %c0_28 = arith.constant 0 : index
      %c0_29 = arith.constant 0 : index
      %34 = vector.load %arg8[%c0_28, %c0_29] : memref<1x64xf32, #tpu.memory_space<vmem>>, vector<1x64xf32>
      %35 = vector.broadcast %34 : vector<1x64xf32> to vector<8x64xf32>
      %36 = arith.addf %33, %35 : vector<8x64xf32>
      %cst_30 = arith.constant 0.000000e+00 : f32
      %37 = vector.broadcast %cst_30 : f32 to vector<8x64xf32>
      %38 = arith.maximumf %36, %37 : vector<8x64xf32>
      %39 = arith.truncf %38 : vector<8x64xf32> to vector<8x64xbf16>
      %c0_31 = arith.constant 0 : index
      %c0_32 = arith.constant 0 : index
      %40 = vector.load %arg9[%c0_31, %c0_32] : memref<64x128xbf16, #tpu.memory_space<vmem>>, vector<64x128xbf16>
      %cst_33 = arith.constant dense<0.000000e+00> : vector<8x128xf32>
      %41 = tpu.matmul %39, %40, %cst_33 {dimension_numbers = #tpu.dot_dimension_numbers<[1], [0], [0], [1], [0, 0, 1, 1], [], []>} : vector<8x64xbf16>, vector<64x128xbf16>, vector<8x128xf32> -> vector<8x128xf32>
      %c0_34 = arith.constant 0 : index
      %c0_35 = arith.constant 0 : index
      %42 = vector.load %arg10[%c0_34, %c0_35] : memref<1x128xf32, #tpu.memory_space<vmem>>, vector<1x128xf32>
      %43 = vector.broadcast %42 : vector<1x128xf32> to vector<8x128xf32>
      %44 = arith.addf %41, %43 : vector<8x128xf32>
      %c0_36 = arith.constant 0 : index
      %c0_37 = arith.constant 0 : index
      %45 = vector.load %arg12[%c0_36, %c0_37] : memref<8x128xf32, #tpu.memory_space<vmem>>, vector<8x128xf32>
      tpu.vector_store %arg12[%c0_36, %c0_37], %44 {strides = array<i32>} : memref<8x128xf32, #tpu.memory_space<vmem>>, vector<8x128xf32>,
    } else {
    }
    return
  }
  func.func @transform_0(%arg0: i32) -> (i32, i32) {
    %c0_i32 = arith.constant 0 : i32
    %c0_i32_0 = arith.constant 0 : i32
    return %c0_i32, %arg0 : i32, i32
  }
  func.func @transform_1(%arg0: i32) -> (i32, i32) {
    %c0_i32 = arith.constant 0 : i32
    %c0_i32_0 = arith.constant 0 : i32
    return %arg0, %c0_i32 : i32, i32
  }
  func.func @transform_2(%arg0: i32) -> (i32, i32) {
    %c0_i32 = arith.constant 0 : i32
    %c0_i32_0 = arith.constant 0 : i32
    %c0_i32_1 = arith.constant 0 : i32
    return %c0_i32, %c0_i32_0 : i32, i32
  }
  func.func @transform_3(%arg0: i32) -> (i32, i32) {
    %c0_i32 = arith.constant 0 : i32
    %c0_i32_0 = arith.constant 0 : i32
    %c0_i32_1 = arith.constant 0 : i32
    return %c0_i32, %c0_i32_0 : i32, i32
  }
  func.func @transform_4(%arg0: i32) -> (i32, i32) {
    %c0_i32 = arith.constant 0 : i32
    %c0_i32_0 = arith.constant 0 : i32
    %c0_i32_1 = arith.constant 0 : i32
    return %c0_i32, %c0_i32_0 : i32, i32
  }
  func.func @transform_5(%arg0: i32) -> (i32, i32) {
    %c0_i32 = arith.constant 0 : i32
    %c0_i32_0 = arith.constant 0 : i32
    %c0_i32_1 = arith.constant 0 : i32
    return %c0_i32, %c0_i32_0 : i32, i32
  }
  func.func @transform_6(%arg0: i32) -> (i32, i32) {
    %c0_i32 = arith.constant 0 : i32
    %c0_i32_0 = arith.constant 0 : i32
    %c0_i32_1 = arith.constant 0 : i32
    return %c0_i32, %c0_i32_0 : i32, i32
  }
  func.func @transform_7(%arg0: i32) -> (i32, i32) {
    %c0_i32 = arith.constant 0 : i32
    %c0_i32_0 = arith.constant 0 : i32
    %c0_i32_1 = arith.constant 0 : i32
    return %c0_i32, %c0_i32_0 : i32, i32
  }
  func.func @transform_8(%arg0: i32) -> (i32, i32) {
    %c0_i32 = arith.constant 0 : i32
    %c0_i32_0 = arith.constant 0 : i32
    %c0_i32_1 = arith.constant 0 : i32
    return %c0_i32, %c0_i32_0 : i32, i32
  }
  func.func @transform_9(%arg0: i32) -> (i32, i32) {
    %c0_i32 = arith.constant 0 : i32
    %c0_i32_0 = arith.constant 0 : i32
    %c0_i32_1 = arith.constant 0 : i32
    return %c0_i32, %c0_i32_0 : i32, i32
  }
  func.func @transform_10(%arg0: i32) -> (i32, i32) {
    %c0_i32 = arith.constant 0 : i32
    %c0_i32_0 = arith.constant 0 : i32
    %c0_i32_1 = arith.constant 0 : i32
    return %c0_i32, %c0_i32_0 : i32, i32
  }
  func.func @transform_11(%arg0: i32) -> (i32, i32) {
    %c0_i32 = arith.constant 0 : i32
    %c0_i32_0 = arith.constant 0 : i32
    %c0_i32_1 = arith.constant 0 : i32
    return %c0_i32, %c0_i32_0 : i32, i32
  }
}

</mosaic_0001>

<llo_original>
// kernel: tpu_custom_call.1
$region0: #{tpu_custom_call.1}
  #allocation0 [shape = 'u32[]', space=smem, size = 0x4, offset = 0x4, fixed_abs, tag = 'smem constant byte address 0x4 - core index']
  #allocation1 [shape = 'u32[144,128]{1,0:T(1,128)}', space=vmem, size = 0x12000, scoped, tag = 'internal scratch']
  #allocation2 [shape = 'f32[8,32]{1,0:T(8,128)}', space=vmem, size = 0x1000, scoped, tag = 'scratch operand']
  %s0 = inlined_call_operand.vmem [shape: s32[1,64], index: 0, kind: input, shape index: {}]
  %s1 = inlined_call_operand.vmem [shape: bf16[64,32], index: 1, kind: input, shape index: {}]
  %s2 = inlined_call_operand.vmem [shape: bf16[8,2048], index: 2, kind: input, shape index: {}]
  %s3 = inlined_call_operand.vmem [shape: bf16[2048,32], index: 3, kind: input, shape index: {}]
  %s4 = inlined_call_operand.vmem [shape: f32[1,32], index: 4, kind: input, shape index: {}]
  %s5 = inlined_call_operand.vmem [shape: bf16[32,64], index: 5, kind: input, shape index: {}]
  %s6 = inlined_call_operand.vmem [shape: bf16[32,64], index: 6, kind: input, shape index: {}]
  %s7 = inlined_call_operand.vmem [shape: f32[1,64], index: 7, kind: input, shape index: {}]
  %s8 = inlined_call_operand.vmem [shape: bf16[64,128], index: 8, kind: input, shape index: {}]
  %s9 = inlined_call_operand.vmem [shape: f32[1,128], index: 9, kind: input, shape index: {}]
  %s10 = inlined_call_operand.hbm [shape: f32[8,64], index: 10, kind: output, shape index: {0}]
  %s11 = inlined_call_operand.hbm [shape: f32[8,128], index: 11, kind: output, shape index: {1}]
  %12 = xla_tuple %s10, %s11
  %s13 = sld [smem:[#allocation0]]
  $region66: #{tpu_custom_call.1} parent=0
    _
  %s15 = ssub.s32 1, %s13
  %s16 = scalar_select 0, %s15, %s13
  $region1: #{tpu_custom_call.1} parent=0
    #allocation3 [shape = 'u8[4096]{0}', space=vmem, size = 0x1000, scoped, tag = 'output window, operand 0, single buffered']
    #allocation4 [shape = 's32[1]{0}', space=sflag, size = 0x4, scoped, tag = 'scoped memory for tpu_custom_call.1']
    #allocation5 [shape = 'u8[4096]{0}', space=vmem, size = 0x1000, scoped, tag = 'output window, operand 1, single buffered']
    #allocation6 [shape = 's32[1]{0}', space=sflag, size = 0x4, scoped, tag = 'scoped memory for tpu_custom_call.1']
    %17 = vsyncpa [#allocation4], 0
    %18 = vsyncpa [#allocation6], 0
    // Predicated region
    $region2: #{tpu_custom_call.1} parent=1 // pred_check
      _
    $region3: #{tpu_custom_call.1} parent=1 // pred_check_branch
      %20 = sbr.rel (0) target = $region5
    $region4: #{tpu_custom_call.1} parent=1 // pred_region
      _
    $region5: #{tpu_custom_call.1} parent=1 // pred_fallthru
      _
    // Predicated region
    $region6: #{tpu_custom_call.1} parent=1 // pred_check
      _
    $region7: #{tpu_custom_call.1} parent=1 // pred_check_branch
      %22 = sbr.rel (0) target = $region9
    $region8: #{tpu_custom_call.1} parent=1 // pred_region
      _
    $region9: #{tpu_custom_call.1} parent=1 // pred_fallthru
      _
    // Predicated region
    $region10: #{tpu_custom_call.1} parent=1 // pred_check
      _
    $region11: #{tpu_custom_call.1} parent=1 // pred_check_branch
      %24 = sbr.rel (0) target = $region13
    $region12: #{tpu_custom_call.1} parent=1 // pred_region
      _
    $region13: #{tpu_custom_call.1} parent=1 // pred_fallthru
      _
    // Predicated region
    $region14: #{tpu_custom_call.1} parent=1 // pred_check
      _
    $region15: #{tpu_custom_call.1} parent=1 // pred_check_branch
      %26 = sbr.rel (0) target = $region17
    $region16: #{tpu_custom_call.1} parent=1 // pred_region
      _
    $region17: #{tpu_custom_call.1} parent=1 // pred_fallthru
      _
    // Predicated region
    $region18: #{tpu_custom_call.1} parent=1 // pred_check
      _
    $region19: #{tpu_custom_call.1} parent=1 // pred_check_branch
      %28 = sbr.rel (0) target = $region21
    $region20: #{tpu_custom_call.1} parent=1 // pred_region
      _
    $region21: #{tpu_custom_call.1} parent=1 // pred_fallthru
      _
    // Predicated region
    $region22: #{tpu_custom_call.1} parent=1 // pred_check
      _
    $region23: #{tpu_custom_call.1} parent=1 // pred_check_branch
      %30 = sbr.rel (0) target = $region25
    $region24: #{tpu_custom_call.1} parent=1 // pred_region
      _
    $region25: #{tpu_custom_call.1} parent=1 // pred_fallthru
      _
    // Predicated region
    $region26: #{tpu_custom_call.1} parent=1 // pred_check
      _
    $region27: #{tpu_custom_call.1} parent=1 // pred_check_branch
      %32 = sbr.rel (0) target = $region29
    $region28: #{tpu_custom_call.1} parent=1 // pred_region
      _
    $region29: #{tpu_custom_call.1} parent=1 // pred_fallthru
      _
    // Predicated region
    $region30: #{tpu_custom_call.1} parent=1 // pred_check
      _
    $region31: #{tpu_custom_call.1} parent=1 // pred_check_branch
      %34 = sbr.rel (0) target = $region33
    $region32: #{tpu_custom_call.1} parent=1 // pred_region
      _
    $region33: #{tpu_custom_call.1} parent=1 // pred_fallthru
      _
    // Predicated region
    $region34: #{tpu_custom_call.1} parent=1 // pred_check
      _
    $region35: #{tpu_custom_call.1} parent=1 // pred_check_branch
      %36 = sbr.rel (0) target = $region37
    $region36: #{tpu_custom_call.1} parent=1 // pred_region
      _
    $region37: #{tpu_custom_call.1} parent=1 // pred_fallthru
      _
    // Predicated region
    $region38: #{tpu_custom_call.1} parent=1 // pred_check
      _
    $region39: #{tpu_custom_call.1} parent=1 // pred_check_branch
      %38 = sbr.rel (0) target = $region41
    $region40: #{tpu_custom_call.1} parent=1 // pred_region
      _
    $region41: #{tpu_custom_call.1} parent=1 // pred_fallthru
      _
    %p40 = scmp.eq.s32.totalorder 0, 0
    // Predicated region
    $region42: #{tpu_custom_call.1} parent=1 // pred_check
      %p41 = pneg %p40
    $region43: #{tpu_custom_call.1} parent=1 // pred_check_branch
      %43 = sbr.rel (%p41) target = $region45
    $region44: #{tpu_custom_call.1} parent=1 // pred_region
      %vm44 = vcmask 261120
      %45 = vst.msk [vmem:[#allocation2] sm:$0xff] %vm44, 0.0
    $region45: #{tpu_custom_call.1} parent=1 // pred_fallthru
      _
    %v46 = vlaneseq
    %v47 = vshrl.u32 %v46, 7
    %v48 = vld [vmem:[%s0] sm:$0x1]
    %v49 = vlaneseq
    %v50 = vshrl.u32 %v49, 7
    %v51 = vsub.s32 0, %v50
    %v52 = vrot.slane %v48, %v51
    %vm53 = vcmp.eq.s32.totalorder %v52, %v47
    %v54 = vsel %vm53, 1, 0
    %v55 = vcvt.s32.f32 %v54
    %v56 = vpack.c.bf16 %v55, %v55
    %v57 = vld [vmem:[#allocation2] sm:$0xff]
    %v58 = vld [vmem:[%s1] sm:$0xf]
    %v59 = vld [vmem:[%s1 + $0x4] sm:$0xf]
    %v60 = vld [vmem:[%s1 + $0x8] sm:$0xf]
    %v61 = vld [vmem:[%s1 + $0xc] sm:$0xf]
    %v62 = vld [vmem:[%s1 + $0x10] sm:$0xf]
    %v63 = vld [vmem:[%s1 + $0x14] sm:$0xf]
    %v64 = vld [vmem:[%s1 + $0x18] sm:$0xf]
    %v65 = vld [vmem:[%s1 + $0x1c] sm:$0xf]
    %v74 = vunpack.c.l.b16 %v58
    %v75 = vunpack.c.l.b16 %v59
    %v76 = vunpack.c.l.b16 %v60
    %v77 = vunpack.c.l.b16 %v61
    %v78 = vunpack.c.l.b16 %v62
    %v79 = vunpack.c.l.b16 %v63
    %v80 = vunpack.c.l.b16 %v64
    %v81 = vunpack.c.l.b16 %v65
    %v82 = vpack.c.b16 %v75, %v74
    %v83 = vpack.c.b16 %v77, %v76
    %v84 = vpack.c.b16 %v79, %v78
    %v85 = vpack.c.b16 %v81, %v80
    %vm90 = vcmask 523264
    %v92 = vsel %vm90, %v56, 0
    %94 = vmatprep.subr.bf16.mxu0 0
    %95 = vmatpush1.bf16.msra.mxu0 %v82
    %96 = vmatprep.subr.bf16.mxu0 0
    %97 = vmatpush1.bf16.msra.mxu0 %v83
    %98 = vmatprep.subr.bf16.mxu0 0
    %99 = vmatpush1.bf16.msra.mxu0 %v84
    %100 = vmatprep.subr.bf16.mxu0 0
    %101 = vmatpush1.bf16.msra.mxu0 %v85
    %102 = vmatprep.subr.bf16.mxu0 0
    %103 = vmatpush1.bf16.msra.mxu0 0
    %104 = vmatprep.subr.bf16.mxu0 0
    %105 = vmatpush1.bf16.msra.mxu0 0
    %106 = vmatprep.subr.bf16.mxu0 0
    %107 = vmatpush1.bf16.msra.mxu0 0
    %108 = vmatprep.subr.bf16.mxu0 0
    %109 = vmatpush1.bf16.msra.mxu0 0
    %110 = vmatprep.subr.bf16.mxu0 0
    %111 = vmatpush1.bf16.msra.mxu0 0
    %112 = vmatprep.subr.bf16.mxu0 0
    %113 = vmatpush1.bf16.msra.mxu0 0
    %114 = vmatprep.subr.bf16.mxu0 0
    %115 = vmatpush1.bf16.msra.mxu0 0
    %116 = vmatprep.subr.bf16.mxu0 0
    %117 = vmatpush1.bf16.msra.mxu0 0
    %118 = vmatprep.subr.bf16.mxu0 0
    %119 = vmatpush1.bf16.msra.mxu0 0
    %120 = vmatprep.subr.bf16.mxu0 0
    %121 = vmatpush1.bf16.msra.mxu0 0
    %122 = vmatprep.subr.bf16.mxu0 0
    %123 = vmatpush1.bf16.msra.mxu0 0
    %124 = vmatprep.subr.bf16.mxu0 0
    %125 = vmatpush1.bf16.msra.mxu0 0
    %126 = vmatprep.mubr.bf16.mxu0 0
    %127 = vmatmul.mubr.bf16.gmra.mrb[0].mxu0 %v92
    %v128 = vpop.f32.mrb[0].mxu0
    %v129 = vadd.f32 0.0, %v128
    %v130 = vpop.f32.mrb[0].mxu0
    %v131 = vpop.f32.mrb[0].mxu0
    %v132 = vpop.f32.mrb[0].mxu0
    %133 = vdwg.mxu0
    %v134 = vadd.f32 %v57, %v129
    %vm135 = vcmask 261120
    %136 = vst.msk [vmem:[#allocation2] sm:$0xff] %vm135, %v134
    // Predicated region
    $region46: #{tpu_custom_call.1} parent=1 // pred_check
      %p137 = pneg %p40
    $region47: #{tpu_custom_call.1} parent=1 // pred_check_branch
      %139 = sbr.rel (%p137) target = $region49
    $region48: #{tpu_custom_call.1} parent=1 // pred_region
      %v140 = vld [vmem:[#allocation2] sm:$0xff]
      %v141 = vld [vmem:[%s2] sm:$0xff]
      %v142 = vld [vmem:[%s2 + $0x8] sm:$0xff]
      %v143 = vld [vmem:[%s2 + $0x10] sm:$0xff]
      %v144 = vld [vmem:[%s2 + $0x18] sm:$0xff]
      %v145 = vld [vmem:[%s2 + $0x20] sm:$0xff]
      %v146 = vld [vmem:[%s2 + $0x28] sm:$0xff]
      %v147 = vld [vmem:[%s2 + $0x30] sm:$0xff]
      %v148 = vld [vmem:[%s2 + $0x38] sm:$0xff]
      %v149 = vld [vmem:[%s3] sm:$0xf]
      %v150 = vld [vmem:[%s3 + $0x4] sm:$0xf]
      %v151 = vld [vmem:[%s3 + $0x8] sm:$0xf]
      %v152 = vld [vmem:[%s3 + $0xc] sm:$0xf]
      %v153 = vld [vmem:[%s3 + $0x10] sm:$0xf]
      %v154 = vld [vmem:[%s3 + $0x14] sm:$0xf]
      %v155 = vld [vmem:[%s3 + $0x18] sm:$0xf]
      %v156 = vld [vmem:[%s3 + $0x1c] sm:$0xf]
      %v157 = vld [vmem:[%s3 + $0x20] sm:$0xf]
      %v158 = vld [vmem:[%s3 + $0x24] sm:$0xf]
      %v159 = vld [vmem:[%s3 + $0x28] sm:$0xf]
      %v160 = vld [vmem:[%s3 + $0x2c] sm:$0xf]
      %v161 = vld [vmem:[%s3 + $0x30] sm:$0xf]
      %v162 = vld [vmem:[%s3 + $0x34] sm:$0xf]
      %v163 = vld [vmem:[%s3 + $0x38] sm:$0xf]
      %v164 = vld [vmem:[%s3 + $0x3c] sm:$0xf]
      %v165 = vld [vmem:[%s3 + $0x40] sm:$0xf]
      %v166 = vld [vmem:[%s3 + $0x44] sm:$0xf]
      %v167 = vld [vmem:[%s3 + $0x48] sm:$0xf]
      %v168 = vld [vmem:[%s3 + $0x4c] sm:$0xf]
      %v169 = vld [vmem:[%s3 + $0x50] sm:$0xf]
      %v170 = vld [vmem:[%s3 + $0x54] sm:$0xf]
      %v171 = vld [vmem:[%s3 + $0x58] sm:$0xf]
      %v172 = vld [vmem:[%s3 + $0x5c] sm:$0xf]
      %v173 = vld [vmem:[%s3 + $0x60] sm:$0xf]
      %v174 = vld [vmem:[%s3 + $0x64] sm:$0xf]
      %v175 = vld [vmem:[%s3 + $0x68] sm:$0xf]
      %v176 = vld [vmem:[%s3 + $0x6c] sm:$0xf]
      %v177 = vld [vmem:[%s3 + $0x70] sm:$0xf]
      %v178 = vld [vmem:[%s3 + $0x74] sm:$0xf]
      %v179 = vld [vmem:[%s3 + $0x78] sm:$0xf]
      %v180 = vld [vmem:[%s3 + $0x7c] sm:$0xf]
      %v181 = vld [vmem:[%s3 + $0x80] sm:$0xf]
      %v182 = vld [vmem:[%s3 + $0x84] sm:$0xf]
      %v183 = vld [vmem:[%s3 + $0x88] sm:$0xf]
      %v184 = vld [vmem:[%s3 + $0x8c] sm:$0xf]
      %v185 = vld [vmem:[%s3 + $0x90] sm:$0xf]
      %v186 = vld [vmem:[%s3 + $0x94] sm:$0xf]
      %v187 = vld [vmem:[%s3 + $0x98] sm:$0xf]
      %v188 = vld [vmem:[%s3 + $0x9c] sm:$0xf]
      %v189 = vld [vmem:[%s3 + $0xa0] sm:$0xf]
      %v190 = vld [vmem:[%s3 + $0xa4] sm:$0xf]
      %v191 = vld [vmem:[%s3 + $0xa8] sm:$0xf]
      %v192 = vld [vmem:[%s3 + $0xac] sm:$0xf]
      %v193 = vld [vmem:[%s3 + $0xb0] sm:$0xf]
      %v194 = vld [vmem:[%s3 + $0xb4] sm:$0xf]
      %v195 = vld [vmem:[%s3 + $0xb8] sm:$0xf]
      %v196 = vld [vmem:[%s3 + $0xbc] sm:$0xf]
      %v197 = vld [vmem:[%s3 + $0xc0] sm:$0xf]
      %v198 = vld [vmem:[%s3 + $0xc4] sm:$0xf]
      %v199 = vld [vmem:[%s3 + $0xc8] sm:$0xf]
      %v200 = vld [vmem:[%s3 + $0xcc] sm:$0xf]
      %v201 = vld [vmem:[%s3 + $0xd0] sm:$0xf]
      %v202 = vld [vmem:[%s3 + $0xd4] sm:$0xf]
      %v203 = vld [vmem:[%s3 + $0xd8] sm:$0xf]
      %v204 = vld [vmem:[%s3 + $0xdc] sm:$0xf]
      %v205 = vld [vmem:[%s3 + $0xe0] sm:$0xf]
      %v206 = vld [vmem:[%s3 + $0xe4] sm:$0xf]
      %v207 = vld [vmem:[%s3 + $0xe8] sm:$0xf]
      %v208 = vld [vmem:[%s3 + $0xec] sm:$0xf]
      %v209 = vld [vmem:[%s3 + $0xf0] sm:$0xf]
      %v210 = vld [vmem:[%s3 + $0xf4] sm:$0xf]
      %v211 = vld [vmem:[%s3 + $0xf8] sm:$0xf]
      %v212 = vld [vmem:[%s3 + $0xfc] sm:$0xf]
      %v213 = vld [vmem:[%s3 + $0x100] sm:$0xf]
      %v214 = vld [vmem:[%s3 + $0x104] sm:$0xf]
      %v215 = vld [vmem:[%s3 + $0x108] sm:$0xf]
      %v216 = vld [vmem:[%s3 + $0x10c] sm:$0xf]
      %v217 = vld [vmem:[%s3 + $0x110] sm:$0xf]
      %v218 = vld [vmem:[%s3 + $0x114] sm:$0xf]
      %v219 = vld [vmem:[%s3 + $0x118] sm:$0xf]
      %v220 = vld [vmem:[%s3 + $0x11c] sm:$0xf]
      %v221 = vld [vmem:[%s3 + $0x120] sm:$0xf]
      %v222 = vld [vmem:[%s3 + $0x124] sm:$0xf]
      %v223 = vld [vmem:[%s3 + $0x128] sm:$0xf]
      %v224 = vld [vmem:[%s3 + $0x12c] sm:$0xf]
      %v225 = vld [vmem:[%s3 + $0x130] sm:$0xf]
      %v226 = vld [vmem:[%s3 + $0x134] sm:$0xf]
      %v227 = vld [vmem:[%s3 + $0x138] sm:$0xf]
      %v228 = vld [vmem:[%s3 + $0x13c] sm:$0xf]
      %v229 = vld [vmem:[%s3 + $0x140] sm:$0xf]
      %v230 = vld [vmem:[%s3 + $0x144] sm:$0xf]
      %v231 = vld [vmem:[%s3 + $0x148] sm:$0xf]
      %v232 = vld [vmem:[%s3 + $0x14c] sm:$0xf]
      %v233 = vld [vmem:[%s3 + $0x150] sm:$0xf]
      %v234 = vld [vmem:[%s3 + $0x154] sm:$0xf]
      %v235 = vld [vmem:[%s3 + $0x158] sm:$0xf]
      %v236 = vld [vmem:[%s3 + $0x15c] sm:$0xf]
      %v237 = vld [vmem:[%s3 + $0x160] sm:$0xf]
      %v238 = vld [vmem:[%s3 + $0x164] sm:$0xf]
      %v239 = vld [vmem:[%s3 + $0x168] sm:$0xf]
      %v240 = vld [vmem:[%s3 + $0x16c] sm:$0xf]
      %v241 = vld [vmem:[%s3 + $0x170] sm:$0xf]
      %v242 = vld [vmem:[%s3 + $0x174] sm:$0xf]
      %v243 = vld [vmem:[%s3 + $0x178] sm:$0xf]
      %v244 = vld [vmem:[%s3 + $0x17c] sm:$0xf]
      %v245 = vld [vmem:[%s3 + $0x180] sm:$0xf]
      %v246 = vld [vmem:[%s3 + $0x184] sm:$0xf]
      %v247 = vld [vmem:[%s3 + $0x188] sm:$0xf]
      %v248 = vld [vmem:[%s3 + $0x18c] sm:$0xf]
      %v249 = vld [vmem:[%s3 + $0x190] sm:$0xf]
      %v250 = vld [vmem:[%s3 + $0x194] sm:$0xf]
      %v251 = vld [vmem:[%s3 + $0x198] sm:$0xf]
      %v252 = vld [vmem:[%s3 + $0x19c] sm:$0xf]
      %v253 = vld [vmem:[%s3 + $0x1a0] sm:$0xf]
      %v254 = vld [vmem:[%s3 + $0x1a4] sm:$0xf]
      %v255 = vld [vmem:[%s3 + $0x1a8] sm:$0xf]
      %v256 = vld [vmem:[%s3 + $0x1ac] sm:$0xf]
      %v257 = vld [vmem:[%s3 + $0x1b0] sm:$0xf]
      %v258 = vld [vmem:[%s3 + $0x1b4] sm:$0xf]
      %v259 = vld [vmem:[%s3 + $0x1b8] sm:$0xf]
      %v260 = vld [vmem:[%s3 + $0x1bc] sm:$0xf]
      %v261 = vld [vmem:[%s3 + $0x1c0] sm:$0xf]
      %v262 = vld [vmem:[%s3 + $0x1c4] sm:$0xf]
      %v263 = vld [vmem:[%s3 + $0x1c8] sm:$0xf]
      %v264 = vld [vmem:[%s3 + $0x1cc] sm:$0xf]
      %v265 = vld [vmem:[%s3 + $0x1d0] sm:$0xf]
      %v266 = vld [vmem:[%s3 + $0x1d4] sm:$0xf]
      %v267 = vld [vmem:[%s3 + $0x1d8] sm:$0xf]
      %v268 = vld [vmem:[%s3 + $0x1dc] sm:$0xf]
      %v269 = vld [vmem:[%s3 + $0x1e0] sm:$0xf]
      %v270 = vld [vmem:[%s3 + $0x1e4] sm:$0xf]
      %v271 = vld [vmem:[%s3 + $0x1e8] sm:$0xf]
      %v272 = vld [vmem:[%s3 + $0x1ec] sm:$0xf]
      %v273 = vld [vmem:[%s3 + $0x1f0] sm:$0xf]
      %v274 = vld [vmem:[%s3 + $0x1f4] sm:$0xf]
      %v275 = vld [vmem:[%s3 + $0x1f8] sm:$0xf]
      %v276 = vld [vmem:[%s3 + $0x1fc] sm:$0xf]
      %v277 = vld [vmem:[%s3 + $0x200] sm:$0xf]
      %v278 = vld [vmem:[%s3 + $0x204] sm:$0xf]
      %v279 = vld [vmem:[%s3 + $0x208] sm:$0xf]
      %v280 = vld [vmem:[%s3 + $0x20c] sm:$0xf]
      %v281 = vld [vmem:[%s3 + $0x210] sm:$0xf]
      %v282 = vld [vmem:[%s3 + $0x214] sm:$0xf]
      %v283 = vld [vmem:[%s3 + $0x218] sm:$0xf]
      %v284 = vld [vmem:[%s3 + $0x21c] sm:$0xf]
      %v285 = vld [vmem:[%s3 + $0x220] sm:$0xf]
      %v286 = vld [vmem:[%s3 + $0x224] sm:$0xf]
      %v287 = vld [vmem:[%s3 + $0x228] sm:$0xf]
      %v288 = vld [vmem:[%s3 + $0x22c] sm:$0xf]
      %v289 = vld [vmem:[%s3 + $0x230] sm:$0xf]
      %v290 = vld [vmem:[%s3 + $0x234] sm:$0xf]
      %v291 = vld [vmem:[%s3 + $0x238] sm:$0xf]
      %v292 = vld [vmem:[%s3 + $0x23c] sm:$0xf]
      %v293 = vld [vmem:[%s3 + $0x240] sm:$0xf]
      %v294 = vld [vmem:[%s3 + $0x244] sm:$0xf]
      %v295 = vld [vmem:[%s3 + $0x248] sm:$0xf]
      %v296 = vld [vmem:[%s3 + $0x24c] sm:$0xf]
      %v297 = vld [vmem:[%s3 + $0x250] sm:$0xf]
      %v298 = vld [vmem:[%s3 + $0x254] sm:$0xf]
      %v299 = vld [vmem:[%s3 + $0x258] sm:$0xf]
      %v300 = vld [vmem:[%s3 + $0x25c] sm:$0xf]
      %v301 = vld [vmem:[%s3 + $0x260] sm:$0xf]
      %v302 = vld [vmem:[%s3 + $0x264] sm:$0xf]
      %v303 = vld [vmem:[%s3 + $0x268] sm:$0xf]
      %v304 = vld [vmem:[%s3 + $0x26c] sm:$0xf]
      %v305 = vld [vmem:[%s3 + $0x270] sm:$0xf]
      %v306 = vld [vmem:[%s3 + $0x274] sm:$0xf]
      %v307 = vld [vmem:[%s3 + $0x278] sm:$0xf]
      %v308 = vld [vmem:[%s3 + $0x27c] sm:$0xf]
      %v309 = vld [vmem:[%s3 + $0x280] sm:$0xf]
      %v310 = vld [vmem:[%s3 + $0x284] sm:$0xf]
      %v311 = vld [vmem:[%s3 + $0x288] sm:$0xf]
      %v312 = vld [vmem:[%s3 + $0x28c] sm:$0xf]
      %v313 = vld [vmem:[%s3 + $0x290] sm:$0xf]
      %v314 = vld [vmem:[%s3 + $0x294] sm:$0xf]
      %v315 = vld [vmem:[%s3 + $0x298] sm:$0xf]
      %v316 = vld [vmem:[%s3 + $0x29c] sm:$0xf]
      %v317 = vld [vmem:[%s3 + $0x2a0] sm:$0xf]
      %v318 = vld [vmem:[%s3 + $0x2a4] sm:$0xf]
      %v319 = vld [vmem:[%s3 + $0x2a8] sm:$0xf]
      %v320 = vld [vmem:[%s3 + $0x2ac] sm:$0xf]
      %v321 = vld [vmem:[%s3 + $0x2b0] sm:$0xf]
      %v322 = vld [vmem:[%s3 + $0x2b4] sm:$0xf]
      %v323 = vld [vmem:[%s3 + $0x2b8] sm:$0xf]
      %v324 = vld [vmem:[%s3 + $0x2bc] sm:$0xf]
      %v325 = vld [vmem:[%s3 + $0x2c0] sm:$0xf]
      %v326 = vld [vmem:[%s3 + $0x2c4] sm:$0xf]
      %v327 = vld [vmem:[%s3 + $0x2c8] sm:$0xf]
      %v328 = vld [vmem:[%s3 + $0x2cc] sm:$0xf]
      %v329 = vld [vmem:[%s3 + $0x2d0] sm:$0xf]
      %v330 = vld [vmem:[%s3 + $0x2d4] sm:$0xf]
      %v331 = vld [vmem:[%s3 + $0x2d8] sm:$0xf]
      %v332 = vld [vmem:[%s3 + $0x2dc] sm:$0xf]
      %v333 = vld [vmem:[%s3 + $0x2e0] sm:$0xf]
      %v334 = vld [vmem:[%s3 + $0x2e4] sm:$0xf]
      %v335 = vld [vmem:[%s3 + $0x2e8] sm:$0xf]
      %v336 = vld [vmem:[%s3 + $0x2ec] sm:$0xf]
      %v337 = vld [vmem:[%s3 + $0x2f0] sm:$0xf]
      %v338 = vld [vmem:[%s3 + $0x2f4] sm:$0xf]
      %v339 = vld [vmem:[%s3 + $0x2f8] sm:$0xf]
      %v340 = vld [vmem:[%s3 + $0x2fc] sm:$0xf]
      %v341 = vld [vmem:[%s3 + $0x300] sm:$0xf]
      %v342 = vld [vmem:[%s3 + $0x304] sm:$0xf]
      %v343 = vld [vmem:[%s3 + $0x308] sm:$0xf]
      %v344 = vld [vmem:[%s3 + $0x30c] sm:$0xf]
      %v345 = vld [vmem:[%s3 + $0x310] sm:$0xf]
      %v346 = vld [vmem:[%s3 + $0x314] sm:$0xf]
      %v347 = vld [vmem:[%s3 + $0x318] sm:$0xf]
      %v348 = vld [vmem:[%s3 + $0x31c] sm:$0xf]
      %v349 = vld [vmem:[%s3 + $0x320] sm:$0xf]
      %v350 = vld [vmem:[%s3 + $0x324] sm:$0xf]
      %v351 = vld [vmem:[%s3 + $0x328] sm:$0xf]
      %v352 = vld [vmem:[%s3 + $0x32c] sm:$0xf]
      %v353 = vld [vmem:[%s3 + $0x330] sm:$0xf]
      %v354 = vld [vmem:[%s3 + $0x334] sm:$0xf]
      %v355 = vld [vmem:[%s3 + $0x338] sm:$0xf]
      %v356 = vld [vmem:[%s3 + $0x33c] sm:$0xf]
      %v357 = vld [vmem:[%s3 + $0x340] sm:$0xf]
      %v358 = vld [vmem:[%s3 + $0x344] sm:$0xf]
      %v359 = vld [vmem:[%s3 + $0x348] sm:$0xf]
      %v360 = vld [vmem:[%s3 + $0x34c] sm:$0xf]
      %v361 = vld [vmem:[%s3 + $0x350] sm:$0xf]
      %v362 = vld [vmem:[%s3 + $0x354] sm:$0xf]
      %v363 = vld [vmem:[%s3 + $0x358] sm:$0xf]
      %v364 = vld [vmem:[%s3 + $0x35c] sm:$0xf]
      %v365 = vld [vmem:[%s3 + $0x360] sm:$0xf]
      %v366 = vld [vmem:[%s3 + $0x364] sm:$0xf]
      %v367 = vld [vmem:[%s3 + $0x368] sm:$0xf]
      %v368 = vld [vmem:[%s3 + $0x36c] sm:$0xf]
      %v369 = vld [vmem:[%s3 + $0x370] sm:$0xf]
      %v370 = vld [vmem:[%s3 + $0x374] sm:$0xf]
      %v371 = vld [vmem:[%s3 + $0x378] sm:$0xf]
      %v372 = vld [vmem:[%s3 + $0x37c] sm:$0xf]
      %v373 = vld [vmem:[%s3 + $0x380] sm:$0xf]
      %v374 = vld [vmem:[%s3 + $0x384] sm:$0xf]
      %v375 = vld [vmem:[%s3 + $0x388] sm:$0xf]
      %v376 = vld [vmem:[%s3 + $0x38c] sm:$0xf]
      %v377 = vld [vmem:[%s3 + $0x390] sm:$0xf]
      %v378 = vld [vmem:[%s3 + $0x394] sm:$0xf]
      %v379 = vld [vmem:[%s3 + $0x398] sm:$0xf]
      %v380 = vld [vmem:[%s3 + $0x39c] sm:$0xf]
      %v381 = vld [vmem:[%s3 + $0x3a0] sm:$0xf]
      %v382 = vld [vmem:[%s3 + $0x3a4] sm:$0xf]
      %v383 = vld [vmem:[%s3 + $0x3a8] sm:$0xf]
      %v384 = vld [vmem:[%s3 + $0x3ac] sm:$0xf]
      %v385 = vld [vmem:[%s3 + $0x3b0] sm:$0xf]
      %v386 = vld [vmem:[%s3 + $0x3b4] sm:$0xf]
      %v387 = vld [vmem:[%s3 + $0x3b8] sm:$0xf]
      %v388 = vld [vmem:[%s3 + $0x3bc] sm:$0xf]
      %v389 = vld [vmem:[%s3 + $0x3c0] sm:$0xf]
      %v390 = vld [vmem:[%s3 + $0x3c4] sm:$0xf]
      %v391 = vld [vmem:[%s3 + $0x3c8] sm:$0xf]
      %v392 = vld [vmem:[%s3 + $0x3cc] sm:$0xf]
      %v393 = vld [vmem:[%s3 + $0x3d0] sm:$0xf]
      %v394 = vld [vmem:[%s3 + $0x3d4] sm:$0xf]
      %v395 = vld [vmem:[%s3 + $0x3d8] sm:$0xf]
      %v396 = vld [vmem:[%s3 + $0x3dc] sm:$0xf]
      %v397 = vld [vmem:[%s3 + $0x3e0] sm:$0xf]
      %v398 = vld [vmem:[%s3 + $0x3e4] sm:$0xf]
      %v399 = vld [vmem:[%s3 + $0x3e8] sm:$0xf]
      %v400 = vld [vmem:[%s3 + $0x3ec] sm:$0xf]
      %v401 = vld [vmem:[%s3 + $0x3f0] sm:$0xf]
      %v402 = vld [vmem:[%s3 + $0x3f4] sm:$0xf]
      %v403 = vld [vmem:[%s3 + $0x3f8] sm:$0xf]
      %v404 = vld [vmem:[%s3 + $0x3fc] sm:$0xf]
      %v405 = vld [vmem:[%s4] sm:$0x1]
      %v407 = vlaneseq
      %v408 = vshrl.u32 %v407, 7
      %v409 = vsub.s32 0, %v408
      %v410 = vrot.slane %v405, %v409
      %v420 = vunpack.c.l.b16 %v141
      %v421 = vunpack.c.h.b16 %v141
      %v422 = vunpack.c.l.b16 %v142
      %v423 = vunpack.c.h.b16 %v142
      %v424 = vunpack.c.l.b16 %v143
      %v425 = vunpack.c.h.b16 %v143
      %v426 = vunpack.c.l.b16 %v144
      %v427 = vunpack.c.h.b16 %v144
      %v428 = vunpack.c.l.b16 %v145
      %v429 = vunpack.c.h.b16 %v145
      %v430 = vunpack.c.l.b16 %v146
      %v431 = vunpack.c.h.b16 %v146
      %v432 = vunpack.c.l.b16 %v147
      %v433 = vunpack.c.h.b16 %v147
      %v434 = vunpack.c.l.b16 %v148
      %v435 = vunpack.c.h.b16 %v148
      %v436 = vpack.c.b16 %v420, %v420
      %v437 = vpack.c.b16 %v421, %v421
      %v438 = vpack.c.b16 %v422, %v422
      %v439 = vpack.c.b16 %v423, %v423
      %v440 = vpack.c.b16 %v424, %v424
      %v441 = vpack.c.b16 %v425, %v425
      %v442 = vpack.c.b16 %v426, %v426
      %v443 = vpack.c.b16 %v427, %v427
      %v444 = vpack.c.b16 %v428, %v428
      %v445 = vpack.c.b16 %v429, %v429
      %v446 = vpack.c.b16 %v430, %v430
      %v447 = vpack.c.b16 %v431, %v431
      %v448 = vpack.c.b16 %v432, %v432
      %v449 = vpack.c.b16 %v433, %v433
      %v450 = vpack.c.b16 %v434, %v434
      %v451 = vpack.c.b16 %v435, %v435
      %v724 = vunpack.c.l.b16 %v149
      %v725 = vunpack.c.l.b16 %v150
      %v726 = vunpack.c.l.b16 %v151
      %v727 = vunpack.c.l.b16 %v152
      %v728 = vunpack.c.l.b16 %v153
      %v729 = vunpack.c.l.b16 %v154
      %v730 = vunpack.c.l.b16 %v155
      %v731 = vunpack.c.l.b16 %v156
      %v732 = vunpack.c.l.b16 %v157
      %v733 = vunpack.c.l.b16 %v158
      %v734 = vunpack.c.l.b16 %v159
      %v735 = vunpack.c.l.b16 %v160
      %v736 = vunpack.c.l.b16 %v161
      %v737 = vunpack.c.l.b16 %v162
      %v738 = vunpack.c.l.b16 %v163
      %v739 = vunpack.c.l.b16 %v164
      %v740 = vunpack.c.l.b16 %v165
      %v741 = vunpack.c.l.b16 %v166
      %v742 = vunpack.c.l.b16 %v167
      %v743 = vunpack.c.l.b16 %v168
      %v744 = vunpack.c.l.b16 %v169
      %v745 = vunpack.c.l.b16 %v170
      %v746 = vunpack.c.l.b16 %v171
      %v747 = vunpack.c.l.b16 %v172
      %v748 = vunpack.c.l.b16 %v173
      %v749 = vunpack.c.l.b16 %v174
      %v750 = vunpack.c.l.b16 %v175
      %v751 = vunpack.c.l.b16 %v176
      %v752 = vunpack.c.l.b16 %v177
      %v753 = vunpack.c.l.b16 %v178
      %v754 = vunpack.c.l.b16 %v179
      %v755 = vunpack.c.l.b16 %v180
      %v756 = vunpack.c.l.b16 %v181
      %v757 = vunpack.c.l.b16 %v182
      %v758 = vunpack.c.l.b16 %v183
      %v759 = vunpack.c.l.b16 %v184
      %v760 = vunpack.c.l.b16 %v185
      %v761 = vunpack.c.l.b16 %v186
      %v762 = vunpack.c.l.b16 %v187
      %v763 = vunpack.c.l.b16 %v188
      %v764 = vunpack.c.l.b16 %v189
      %v765 = vunpack.c.l.b16 %v190
      %v766 = vunpack.c.l.b16 %v191
      %v767 = vunpack.c.l.b16 %v192
      %v768 = vunpack.c.l.b16 %v193
      %v769 = vunpack.c.l.b16 %v194
      %v770 = vunpack.c.l.b16 %v195
      %v771 = vunpack.c.l.b16 %v196
      %v772 = vunpack.c.l.b16 %v197
      %v773 = vunpack.c.l.b16 %v198
      %v774 = vunpack.c.l.b16 %v199
      %v775 = vunpack.c.l.b16 %v200
      %v776 = vunpack.c.l.b16 %v201
      %v777 = vunpack.c.l.b16 %v202
      %v778 = vunpack.c.l.b16 %v203
      %v779 = vunpack.c.l.b16 %v204
      %v780 = vunpack.c.l.b16 %v205
      %v781 = vunpack.c.l.b16 %v206
      %v782 = vunpack.c.l.b16 %v207
      %v783 = vunpack.c.l.b16 %v208
      %v784 = vunpack.c.l.b16 %v209
      %v785 = vunpack.c.l.b16 %v210
      %v786 = vunpack.c.l.b16 %v211
      %v787 = vunpack.c.l.b16 %v212
      %v788 = vunpack.c.l.b16 %v213
      %v789 = vunpack.c.l.b16 %v214
      %v790 = vunpack.c.l.b16 %v215
      %v791 = vunpack.c.l.b16 %v216
      %v792 = vunpack.c.l.b16 %v217
      %v793 = vunpack.c.l.b16 %v218
      %v794 = vunpack.c.l.b16 %v219
      %v795 = vunpack.c.l.b16 %v220
      %v796 = vunpack.c.l.b16 %v221
      %v797 = vunpack.c.l.b16 %v222
      %v798 = vunpack.c.l.b16 %v223
      %v799 = vunpack.c.l.b16 %v224
      %v800 = vunpack.c.l.b16 %v225
      %v801 = vunpack.c.l.b16 %v226
      %v802 = vunpack.c.l.b16 %v227
      %v803 = vunpack.c.l.b16 %v228
      %v804 = vunpack.c.l.b16 %v229
      %v805 = vunpack.c.l.b16 %v230
      %v806 = vunpack.c.l.b16 %v231
      %v807 = vunpack.c.l.b16 %v232
      %v808 = vunpack.c.l.b16 %v233
      %v809 = vunpack.c.l.b16 %v234
      %v810 = vunpack.c.l.b16 %v235
      %v811 = vunpack.c.l.b16 %v236
      %v812 = vunpack.c.l.b16 %v237
      %v813 = vunpack.c.l.b16 %v238
      %v814 = vunpack.c.l.b16 %v239
      %v815 = vunpack.c.l.b16 %v240
      %v816 = vunpack.c.l.b16 %v241
      %v817 = vunpack.c.l.b16 %v242
      %v818 = vunpack.c.l.b16 %v243
      %v819 = vunpack.c.l.b16 %v244
      %v820 = vunpack.c.l.b16 %v245
      %v821 = vunpack.c.l.b16 %v246
      %v822 = vunpack.c.l.b16 %v247
      %v823 = vunpack.c.l.b16 %v248
      %v824 = vunpack.c.l.b16 %v249
      %v825 = vunpack.c.l.b16 %v250
      %v826 = vunpack.c.l.b16 %v251
      %v827 = vunpack.c.l.b16 %v252
      %v828 = vunpack.c.l.b16 %v253
      %v829 = vunpack.c.l.b16 %v254
      %v830 = vunpack.c.l.b16 %v255
      %v831 = vunpack.c.l.b16 %v256
      %v832 = vunpack.c.l.b16 %v257
      %v833 = vunpack.c.l.b16 %v258
      %v834 = vunpack.c.l.b16 %v259
      %v835 = vunpack.c.l.b16 %v260
      %v836 = vunpack.c.l.b16 %v261
      %v837 = vunpack.c.l.b16 %v262
      %v838 = vunpack.c.l.b16 %v263
      %v839 = vunpack.c.l.b16 %v264
      %v840 = vunpack.c.l.b16 %v265
      %v841 = vunpack.c.l.b16 %v266
      %v842 = vunpack.c.l.b16 %v267
      %v843 = vunpack.c.l.b16 %v268
      %v844 = vunpack.c.l.b16 %v269
      %v845 = vunpack.c.l.b16 %v270
      %v846 = vunpack.c.l.b16 %v271
      %v847 = vunpack.c.l.b16 %v272
      %v848 = vunpack.c.l.b16 %v273
      %v849 = vunpack.c.l.b16 %v274
      %v850 = vunpack.c.l.b16 %v275
      %v851 = vunpack.c.l.b16 %v276
      %v852 = vunpack.c.l.b16 %v277
      %v853 = vunpack.c.l.b16 %v278
      %v854 = vunpack.c.l.b16 %v279
      %v855 = vunpack.c.l.b16 %v280
      %v856 = vunpack.c.l.b16 %v281
      %v857 = vunpack.c.l.b16 %v282
      %v858 = vunpack.c.l.b16 %v283
      %v859 = vunpack.c.l.b16 %v284
      %v860 = vunpack.c.l.b16 %v285
      %v861 = vunpack.c.l.b16 %v286
      %v862 = vunpack.c.l.b16 %v287
      %v863 = vunpack.c.l.b16 %v288
      %v864 = vunpack.c.l.b16 %v289
      %v865 = vunpack.c.l.b16 %v290
      %v866 = vunpack.c.l.b16 %v291
      %v867 = vunpack.c.l.b16 %v292
      %v868 = vunpack.c.l.b16 %v293
      %v869 = vunpack.c.l.b16 %v294
      %v870 = vunpack.c.l.b16 %v295
      %v871 = vunpack.c.l.b16 %v296
      %v872 = vunpack.c.l.b16 %v297
      %v873 = vunpack.c.l.b16 %v298
      %v874 = vunpack.c.l.b16 %v299
      %v875 = vunpack.c.l.b16 %v300
      %v876 = vunpack.c.l.b16 %v301
      %v877 = vunpack.c.l.b16 %v302
      %v878 = vunpack.c.l.b16 %v303
      %v879 = vunpack.c.l.b16 %v304
      %v880 = vunpack.c.l.b16 %v305
      %v881 = vunpack.c.l.b16 %v306
      %v882 = vunpack.c.l.b16 %v307
      %v883 = vunpack.c.l.b16 %v308
      %v884 = vunpack.c.l.b16 %v309
      %v885 = vunpack.c.l.b16 %v310
      %v886 = vunpack.c.l.b16 %v311
      %v887 = vunpack.c.l.b16 %v312
      %v888 = vunpack.c.l.b16 %v313
      %v889 = vunpack.c.l.b16 %v314
      %v890 = vunpack.c.l.b16 %v315
      %v891 = vunpack.c.l.b16 %v316
      %v892 = vunpack.c.l.b16 %v317
      %v893 = vunpack.c.l.b16 %v318
      %v894 = vunpack.c.l.b16 %v319
      %v895 = vunpack.c.l.b16 %v320
      %v896 = vunpack.c.l.b16 %v321
      %v897 = vunpack.c.l.b16 %v322
      %v898 = vunpack.c.l.b16 %v323
      %v899 = vunpack.c.l.b16 %v324
      %v900 = vunpack.c.l.b16 %v325
      %v901 = vunpack.c.l.b16 %v326
      %v902 = vunpack.c.l.b16 %v327
      %v903 = vunpack.c.l.b16 %v328
      %v904 = vunpack.c.l.b16 %v329
      %v905 = vunpack.c.l.b16 %v330
      %v906 = vunpack.c.l.b16 %v331
      %v907 = vunpack.c.l.b16 %v332
      %v908 = vunpack.c.l.b16 %v333
      %v909 = vunpack.c.l.b16 %v334
      %v910 = vunpack.c.l.b16 %v335
      %v911 = vunpack.c.l.b16 %v336
      %v912 = vunpack.c.l.b16 %v337
      %v913 = vunpack.c.l.b16 %v338
      %v914 = vunpack.c.l.b16 %v339
      %v915 = vunpack.c.l.b16 %v340
      %v916 = vunpack.c.l.b16 %v341
      %v917 = vunpack.c.l.b16 %v342
      %v918 = vunpack.c.l.b16 %v343
      %v919 = vunpack.c.l.b16 %v344
      %v920 = vunpack.c.l.b16 %v345
      %v921 = vunpack.c.l.b16 %v346
      %v922 = vunpack.c.l.b16 %v347
      %v923 = vunpack.c.l.b16 %v348
      %v924 = vunpack.c.l.b16 %v349
      %v925 = vunpack.c.l.b16 %v350
      %v926 = vunpack.c.l.b16 %v351
      %v927 = vunpack.c.l.b16 %v352
      %v928 = vunpack.c.l.b16 %v353
      %v929 = vunpack.c.l.b16 %v354
      %v930 = vunpack.c.l.b16 %v355
      %v931 = vunpack.c.l.b16 %v356
      %v932 = vunpack.c.l.b16 %v357
      %v933 = vunpack.c.l.b16 %v358
      %v934 = vunpack.c.l.b16 %v359
      %v935 = vunpack.c.l.b16 %v360
      %v936 = vunpack.c.l.b16 %v361
      %v937 = vunpack.c.l.b16 %v362
      %v938 = vunpack.c.l.b16 %v363
      %v939 = vunpack.c.l.b16 %v364
      %v940 = vunpack.c.l.b16 %v365
      %v941 = vunpack.c.l.b16 %v366
      %v942 = vunpack.c.l.b16 %v367
      %v943 = vunpack.c.l.b16 %v368
      %v944 = vunpack.c.l.b16 %v369
      %v945 = vunpack.c.l.b16 %v370
      %v946 = vunpack.c.l.b16 %v371
      %v947 = vunpack.c.l.b16 %v372
      %v948 = vunpack.c.l.b16 %v373
      %v949 = vunpack.c.l.b16 %v374
      %v950 = vunpack.c.l.b16 %v375
      %v951 = vunpack.c.l.b16 %v376
      %v952 = vunpack.c.l.b16 %v377
      %v953 = vunpack.c.l.b16 %v378
      %v954 = vunpack.c.l.b16 %v379
      %v955 = vunpack.c.l.b16 %v380
      %v956 = vunpack.c.l.b16 %v381
      %v957 = vunpack.c.l.b16 %v382
      %v958 = vunpack.c.l.b16 %v383
      %v959 = vunpack.c.l.b16 %v384
      %v960 = vunpack.c.l.b16 %v385
      %v961 = vunpack.c.l.b16 %v386
      %v962 = vunpack.c.l.b16 %v387
      %v963 = vunpack.c.l.b16 %v388
      %v964 = vunpack.c.l.b16 %v389
      %v965 = vunpack.c.l.b16 %v390
      %v966 = vunpack.c.l.b16 %v391
      %v967 = vunpack.c.l.b16 %v392
      %v968 = vunpack.c.l.b16 %v393
      %v969 = vunpack.c.l.b16 %v394
      %v970 = vunpack.c.l.b16 %v395
      %v971 = vunpack.c.l.b16 %v396
      %v972 = vunpack.c.l.b16 %v397
      %v973 = vunpack.c.l.b16 %v398
      %v974 = vunpack.c.l.b16 %v399
      %v975 = vunpack.c.l.b16 %v400
      %v976 = vunpack.c.l.b16 %v401
      %v977 = vunpack.c.l.b16 %v402
      %v978 = vunpack.c.l.b16 %v403
      %v979 = vunpack.c.l.b16 %v404
      %v980 = vpack.c.b16 %v725, %v724
      %v981 = vpack.c.b16 %v727, %v726
      %v982 = vpack.c.b16 %v729, %v728
      %v983 = vpack.c.b16 %v731, %v730
      %v984 = vpack.c.b16 %v733, %v732
      %v985 = vpack.c.b16 %v735, %v734
      %v986 = vpack.c.b16 %v737, %v736
      %v987 = vpack.c.b16 %v739, %v738
      %v988 = vpack.c.b16 %v741, %v740
      %v989 = vpack.c.b16 %v743, %v742
      %v990 = vpack.c.b16 %v745, %v744
      %v991 = vpack.c.b16 %v747, %v746
      %v992 = vpack.c.b16 %v749, %v748
      %v993 = vpack.c.b16 %v751, %v750
      %v994 = vpack.c.b16 %v753, %v752
      %v995 = vpack.c.b16 %v755, %v754
      %v996 = vpack.c.b16 %v757, %v756
      %v997 = vpack.c.b16 %v759, %v758
      %v998 = vpack.c.b16 %v761, %v760
      %v999 = vpack.c.b16 %v763, %v762
      %v1000 = vpack.c.b16 %v765, %v764
      %v1001 = vpack.c.b16 %v767, %v766
      %v1002 = vpack.c.b16 %v769, %v768
      %v1003 = vpack.c.b16 %v771, %v770
      %v1004 = vpack.c.b16 %v773, %v772
      %v1005 = vpack.c.b16 %v775, %v774
      %v1006 = vpack.c.b16 %v777, %v776
      %v1007 = vpack.c.b16 %v779, %v778
      %v1008 = vpack.c.b16 %v781, %v780
      %v1009 = vpack.c.b16 %v783, %v782
      %v1010 = vpack.c.b16 %v785, %v784
      %v1011 = vpack.c.b16 %v787, %v786
      %v1012 = vpack.c.b16 %v789, %v788
      %v1013 = vpack.c.b16 %v791, %v790
      %v1014 = vpack.c.b16 %v793, %v792
      %v1015 = vpack.c.b16 %v795, %v794
      %v1016 = vpack.c.b16 %v797, %v796
      %v1017 = vpack.c.b16 %v799, %v798
      %v1018 = vpack.c.b16 %v801, %v800
      %v1019 = vpack.c.b16 %v803, %v802
      %v1020 = vpack.c.b16 %v805, %v804
      %v1021 = vpack.c.b16 %v807, %v806
      %v1022 = vpack.c.b16 %v809, %v808
      %v1023 = vpack.c.b16 %v811, %v810
      %v1024 = vpack.c.b16 %v813, %v812
      %v1025 = vpack.c.b16 %v815, %v814
      %v1026 = vpack.c.b16 %v817, %v816
      %v1027 = vpack.c.b16 %v819, %v818
      %v1028 = vpack.c.b16 %v821, %v820
      %v1029 = vpack.c.b16 %v823, %v822
      %v1030 = vpack.c.b16 %v825, %v824
      %v1031 = vpack.c.b16 %v827, %v826
      %v1032 = vpack.c.b16 %v829, %v828
      %v1033 = vpack.c.b16 %v831, %v830
      %v1034 = vpack.c.b16 %v833, %v832
      %v1035 = vpack.c.b16 %v835, %v834
      %v1036 = vpack.c.b16 %v837, %v836
      %v1037 = vpack.c.b16 %v839, %v838
      %v1038 = vpack.c.b16 %v841, %v840
      %v1039 = vpack.c.b16 %v843, %v842
      %v1040 = vpack.c.b16 %v845, %v844
      %v1041 = vpack.c.b16 %v847, %v846
      %v1042 = vpack.c.b16 %v849, %v848
      %v1043 = vpack.c.b16 %v851, %v850
      %v1044 = vpack.c.b16 %v853, %v852
      %v1045 = vpack.c.b16 %v855, %v854
      %v1046 = vpack.c.b16 %v857, %v856
      %v1047 = vpack.c.b16 %v859, %v858
      %v1048 = vpack.c.b16 %v861, %v860
      %v1049 = vpack.c.b16 %v863, %v862
      %v1050 = vpack.c.b16 %v865, %v864
      %v1051 = vpack.c.b16 %v867, %v866
      %v1052 = vpack.c.b16 %v869, %v868
      %v1053 = vpack.c.b16 %v871, %v870
      %v1054 = vpack.c.b16 %v873, %v872
      %v1055 = vpack.c.b16 %v875, %v874
      %v1056 = vpack.c.b16 %v877, %v876
      %v1057 = vpack.c.b16 %v879, %v878
      %v1058 = vpack.c.b16 %v881, %v880
      %v1059 = vpack.c.b16 %v883, %v882
      %v1060 = vpack.c.b16 %v885, %v884
      %v1061 = vpack.c.b16 %v887, %v886
      %v1062 = vpack.c.b16 %v889, %v888
      %v1063 = vpack.c.b16 %v891, %v890
      %v1064 = vpack.c.b16 %v893, %v892
      %v1065 = vpack.c.b16 %v895, %v894
      %v1066 = vpack.c.b16 %v897, %v896
      %v1067 = vpack.c.b16 %v899, %v898
      %v1068 = vpack.c.b16 %v901, %v900
      %v1069 = vpack.c.b16 %v903, %v902
      %v1070 = vpack.c.b16 %v905, %v904
      %v1071 = vpack.c.b16 %v907, %v906
      %v1072 = vpack.c.b16 %v909, %v908
      %v1073 = vpack.c.b16 %v911, %v910
      %v1074 = vpack.c.b16 %v913, %v912
      %v1075 = vpack.c.b16 %v915, %v914
      %v1076 = vpack.c.b16 %v917, %v916
      %v1077 = vpack.c.b16 %v919, %v918
      %v1078 = vpack.c.b16 %v921, %v920
      %v1079 = vpack.c.b16 %v923, %v922
      %v1080 = vpack.c.b16 %v925, %v924
      %v1081 = vpack.c.b16 %v927, %v926
      %v1082 = vpack.c.b16 %v929, %v928
      %v1083 = vpack.c.b16 %v931, %v930
      %v1084 = vpack.c.b16 %v933, %v932
      %v1085 = vpack.c.b16 %v935, %v934
      %v1086 = vpack.c.b16 %v937, %v936
      %v1087 = vpack.c.b16 %v939, %v938
      %v1088 = vpack.c.b16 %v941, %v940
      %v1089 = vpack.c.b16 %v943, %v942
      %v1090 = vpack.c.b16 %v945, %v944
      %v1091 = vpack.c.b16 %v947, %v946
      %v1092 = vpack.c.b16 %v949, %v948
      %v1093 = vpack.c.b16 %v951, %v950
      %v1094 = vpack.c.b16 %v953, %v952
      %v1095 = vpack.c.b16 %v955, %v954
      %v1096 = vpack.c.b16 %v957, %v956
      %v1097 = vpack.c.b16 %v959, %v958
      %v1098 = vpack.c.b16 %v961, %v960
      %v1099 = vpack.c.b16 %v963, %v962
      %v1100 = vpack.c.b16 %v965, %v964
      %v1101 = vpack.c.b16 %v967, %v966
      %v1102 = vpack.c.b16 %v969, %v968
      %v1103 = vpack.c.b16 %v971, %v970
      %v1104 = vpack.c.b16 %v973, %v972
      %v1105 = vpack.c.b16 %v975, %v974
      %v1106 = vpack.c.b16 %v977, %v976
      %v1107 = vpack.c.b16 %v979, %v978
      %1236 = vmatprep.subr.bf16.mxu0 0
      %1237 = vmatpush1.bf16.msra.mxu0 %v980
      %1238 = vmatprep.subr.bf16.mxu0 0
      %1239 = vmatpush1.bf16.msra.mxu0 %v981
      %1240 = vmatprep.subr.bf16.mxu0 0
      %1241 = vmatpush1.bf16.msra.mxu0 %v982
      %1242 = vmatprep.subr.bf16.mxu0 0
      %1243 = vmatpush1.bf16.msra.mxu0 %v983
      %1244 = vmatprep.subr.bf16.mxu0 0
      %1245 = vmatpush1.bf16.msra.mxu0 %v984
      %1246 = vmatprep.subr.bf16.mxu0 0
      %1247 = vmatpush1.bf16.msra.mxu0 %v985
      %1248 = vmatprep.subr.bf16.mxu0 0
      %1249 = vmatpush1.bf16.msra.mxu0 %v986
      %1250 = vmatprep.subr.bf16.mxu0 0
      %1251 = vmatpush1.bf16.msra.mxu0 %v987
      %1252 = vmatprep.subr.bf16.mxu0 0
      %1253 = vmatpush1.bf16.msra.mxu0 %v988
      %1254 = vmatprep.subr.bf16.mxu0 0
      %1255 = vmatpush1.bf16.msra.mxu0 %v989
      %1256 = vmatprep.subr.bf16.mxu0 0
      %1257 = vmatpush1.bf16.msra.mxu0 %v990
      %1258 = vmatprep.subr.bf16.mxu0 0
      %1259 = vmatpush1.bf16.msra.mxu0 %v991
      %1260 = vmatprep.subr.bf16.mxu0 0
      %1261 = vmatpush1.bf16.msra.mxu0 %v992
      %1262 = vmatprep.subr.bf16.mxu0 0
      %1263 = vmatpush1.bf16.msra.mxu0 %v993
      %1264 = vmatprep.subr.bf16.mxu0 0
      %1265 = vmatpush1.bf16.msra.mxu0 %v994
      %1266 = vmatprep.subr.bf16.mxu0 0
      %1267 = vmatpush1.bf16.msra.mxu0 %v995
      %1268 = vmatprep.mubr.bf16.mxu0 %v437
      %1269 = vmatmul.mubr.bf16.gmra.mrb[0].mxu0 %v436
      %v1270 = vpop.f32.mrb[0].mxu0
      %v1271 = vadd.f32 %v410, %v1270
      %v1272 = vpop.f32.mrb[0].mxu0
      %v1273 = vpop.f32.mrb[0].mxu0
      %v1274 = vpop.f32.mrb[0].mxu0
      %1275 = vdwg.mxu0
      %1276 = vmatprep.subr.bf16.mxu0 0
      %1277 = vmatpush1.bf16.msra.mxu0 %v996
      %1278 = vmatprep.subr.bf16.mxu0 0
      %1279 = vmatpush1.bf16.msra.mxu0 %v997
      %1280 = vmatprep.subr.bf16.mxu0 0
      %1281 = vmatpush1.bf16.msra.mxu0 %v998
      %1282 = vmatprep.subr.bf16.mxu0 0
      %1283 = vmatpush1.bf16.msra.mxu0 %v999
      %1284 = vmatprep.subr.bf16.mxu0 0
      %1285 = vmatpush1.bf16.msra.mxu0 %v1000
      %1286 = vmatprep.subr.bf16.mxu0 0
      %1287 = vmatpush1.bf16.msra.mxu0 %v1001
      %1288 = vmatprep.subr.bf16.mxu0 0
      %1289 = vmatpush1.bf16.msra.mxu0 %v1002
      %1290 = vmatprep.subr.bf16.mxu0 0
      %1291 = vmatpush1.bf16.msra.mxu0 %v1003
      %1292 = vmatprep.subr.bf16.mxu0 0
      %1293 = vmatpush1.bf16.msra.mxu0 %v1004
      %1294 = vmatprep.subr.bf16.mxu0 0
      %1295 = vmatpush1.bf16.msra.mxu0 %v1005
      %1296 = vmatprep.subr.bf16.mxu0 0
      %1297 = vmatpush1.bf16.msra.mxu0 %v1006
      %1298 = vmatprep.subr.bf16.mxu0 0
      %1299 = vmatpush1.bf16.msra.mxu0 %v1007
      %1300 = vmatprep.subr.bf16.mxu0 0
      %1301 = vmatpush1.bf16.msra.mxu0 %v1008
      %1302 = vmatprep.subr.bf16.mxu0 0
      %1303 = vmatpush1.bf16.msra.mxu0 %v1009
      %1304 = vmatprep.subr.bf16.mxu0 0
      %1305 = vmatpush1.bf16.msra.mxu0 %v1010
      %1306 = vmatprep.subr.bf16.mxu0 0
      %1307 = vmatpush1.bf16.msra.mxu0 %v1011
      %1308 = vmatprep.mubr.bf16.mxu0 %v439
      %1309 = vmatmul.mubr.bf16.gmra.mrb[0].mxu0 %v438
      %v1310 = vpop.f32.mrb[0].mxu0
      %v1311 = vadd.f32 %v1271, %v1310
      %v1312 = vpop.f32.mrb[0].mxu0
      %v1313 = vpop.f32.mrb[0].mxu0
      %v1314 = vpop.f32.mrb[0].mxu0
      %1315 = vdwg.mxu0
      %1316 = vmatprep.subr.bf16.mxu0 0
      %1317 = vmatpush1.bf16.msra.mxu0 %v1012
      %1318 = vmatprep.subr.bf16.mxu0 0
      %1319 = vmatpush1.bf16.msra.mxu0 %v1013
      %1320 = vmatprep.subr.bf16.mxu0 0
      %1321 = vmatpush1.bf16.msra.mxu0 %v1014
      %1322 = vmatprep.subr.bf16.mxu0 0
      %1323 = vmatpush1.bf16.msra.mxu0 %v1015
      %1324 = vmatprep.subr.bf16.mxu0 0
      %1325 = vmatpush1.bf16.msra.mxu0 %v1016
      %1326 = vmatprep.subr.bf16.mxu0 0
      %1327 = vmatpush1.bf16.msra.mxu0 %v1017
      %1328 = vmatprep.subr.bf16.mxu0 0
      %1329 = vmatpush1.bf16.msra.mxu0 %v1018
      %1330 = vmatprep.subr.bf16.mxu0 0
      %1331 = vmatpush1.bf16.msra.mxu0 %v1019
      %1332 = vmatprep.subr.bf16.mxu0 0
      %1333 = vmatpush1.bf16.msra.mxu0 %v1020
      %1334 = vmatprep.subr.bf16.mxu0 0
      %1335 = vmatpush1.bf16.msra.mxu0 %v1021
      %1336 = vmatprep.subr.bf16.mxu0 0
      %1337 = vmatpush1.bf16.msra.mxu0 %v1022
      %1338 = vmatprep.subr.bf16.mxu0 0
      %1339 = vmatpush1.bf16.msra.mxu0 %v1023
      %1340 = vmatprep.subr.bf16.mxu0 0
      %1341 = vmatpush1.bf16.msra.mxu0 %v1024
      %1342 = vmatprep.subr.bf16.mxu0 0
      %1343 = vmatpush1.bf16.msra.mxu0 %v1025
      %1344 = vmatprep.subr.bf16.mxu0 0
      %1345 = vmatpush1.bf16.msra.mxu0 %v1026
      %1346 = vmatprep.subr.bf16.mxu0 0
      %1347 = vmatpush1.bf16.msra.mxu0 %v1027
      %1348 = vmatprep.mubr.bf16.mxu0 %v441
      %1349 = vmatmul.mubr.bf16.gmra.mrb[0].mxu0 %v440
      %v1350 = vpop.f32.mrb[0].mxu0
      %v1351 = vadd.f32 %v1311, %v1350
      %v1352 = vpop.f32.mrb[0].mxu0
      %v1353 = vpop.f32.mrb[0].mxu0
      %v1354 = vpop.f32.mrb[0].mxu0
      %1355 = vdwg.mxu0
      %1356 = vmatprep.subr.bf16.mxu0 0
      %1357 = vmatpush1.bf16.msra.mxu0 %v1028
      %1358 = vmatprep.subr.bf16.mxu0 0
      %1359 = vmatpush1.bf16.msra.mxu0 %v1029
      %1360 = vmatprep.subr.bf16.mxu0 0
      %1361 = vmatpush1.bf16.msra.mxu0 %v1030
      %1362 = vmatprep.subr.bf16.mxu0 0
      %1363 = vmatpush1.bf16.msra.mxu0 %v1031
      %1364 = vmatprep.subr.bf16.mxu0 0
      %1365 = vmatpush1.bf16.msra.mxu0 %v1032
      %1366 = vmatprep.subr.bf16.mxu0 0
      %1367 = vmatpush1.bf16.msra.mxu0 %v1033
      %1368 = vmatprep.subr.bf16.mxu0 0
      %1369 = vmatpush1.bf16.msra.mxu0 %v1034
      %1370 = vmatprep.subr.bf16.mxu0 0
      %1371 = vmatpush1.bf16.msra.mxu0 %v1035
      %1372 = vmatprep.subr.bf16.mxu0 0
      %1373 = vmatpush1.bf16.msra.mxu0 %v1036
      %1374 = vmatprep.subr.bf16.mxu0 0
      %1375 = vmatpush1.bf16.msra.mxu0 %v1037
      %1376 = vmatprep.subr.bf16.mxu0 0
      %1377 = vmatpush1.bf16.msra.mxu0 %v1038
      %1378 = vmatprep.subr.bf16.mxu0 0
      %1379 = vmatpush1.bf16.msra.mxu0 %v1039
      %1380 = vmatprep.subr.bf16.mxu0 0
      %1381 = vmatpush1.bf16.msra.mxu0 %v1040
      %1382 = vmatprep.subr.bf16.mxu0 0
      %1383 = vmatpush1.bf16.msra.mxu0 %v1041
      %1384 = vmatprep.subr.bf16.mxu0 0
      %1385 = vmatpush1.bf16.msra.mxu0 %v1042
      %1386 = vmatprep.subr.bf16.mxu0 0
      %1387 = vmatpush1.bf16.msra.mxu0 %v1043
      %1388 = vmatprep.mubr.bf16.mxu0 %v443
      %1389 = vmatmul.mubr.bf16.gmra.mrb[0].mxu0 %v442
      %v1390 = vpop.f32.mrb[0].mxu0
      %v1391 = vadd.f32 %v1351, %v1390
      %v1392 = vpop.f32.mrb[0].mxu0
      %v1393 = vpop.f32.mrb[0].mxu0
      %v1394 = vpop.f32.mrb[0].mxu0
      %1395 = vdwg.mxu0
      %1396 = vmatprep.subr.bf16.mxu0 0
      %1397 = vmatpush1.bf16.msra.mxu0 %v1044
      %1398 = vmatprep.subr.bf16.mxu0 0
      %1399 = vmatpush1.bf16.msra.mxu0 %v1045
      %1400 = vmatprep.subr.bf16.mxu0 0
      %1401 = vmatpush1.bf16.msra.mxu0 %v1046
      %1402 = vmatprep.subr.bf16.mxu0 0
      %1403 = vmatpush1.bf16.msra.mxu0 %v1047
      %1404 = vmatprep.subr.bf16.mxu0 0
      %1405 = vmatpush1.bf16.msra.mxu0 %v1048
      %1406 = vmatprep.subr.bf16.mxu0 0
      %1407 = vmatpush1.bf16.msra.mxu0 %v1049
      %1408 = vmatprep.subr.bf16.mxu0 0
      %1409 = vmatpush1.bf16.msra.mxu0 %v1050
      %1410 = vmatprep.subr.bf16.mxu0 0
      %1411 = vmatpush1.bf16.msra.mxu0 %v1051
      %1412 = vmatprep.subr.bf16.mxu0 0
      %1413 = vmatpush1.bf16.msra.mxu0 %v1052
      %1414 = vmatprep.subr.bf16.mxu0 0
      %1415 = vmatpush1.bf16.msra.mxu0 %v1053
      %1416 = vmatprep.subr.bf16.mxu0 0
      %1417 = vmatpush1.bf16.msra.mxu0 %v1054
      %1418 = vmatprep.subr.bf16.mxu0 0
      %1419 = vmatpush1.bf16.msra.mxu0 %v1055
      %1420 = vmatprep.subr.bf16.mxu0 0
      %1421 = vmatpush1.bf16.msra.mxu0 %v1056
      %1422 = vmatprep.subr.bf16.mxu0 0
      %1423 = vmatpush1.bf16.msra.mxu0 %v1057
      %1424 = vmatprep.subr.bf16.mxu0 0
      %1425 = vmatpush1.bf16.msra.mxu0 %v1058
      %1426 = vmatprep.subr.bf16.mxu0 0
      %1427 = vmatpush1.bf16.msra.mxu0 %v1059
      %1428 = vmatprep.mubr.bf16.mxu0 %v445
      %1429 = vmatmul.mubr.bf16.gmra.mrb[0].mxu0 %v444
      %v1430 = vpop.f32.mrb[0].mxu0
      %v1431 = vadd.f32 %v1391, %v1430
      %v1432 = vpop.f32.mrb[0].mxu0
      %v1433 = vpop.f32.mrb[0].mxu0
      %v1434 = vpop.f32.mrb[0].mxu0
      %1435 = vdwg.mxu0
      %1436 = vmatprep.subr.bf16.mxu0 0
      %1437 = vmatpush1.bf16.msra.mxu0 %v1060
      %1438 = vmatprep.subr.bf16.mxu0 0
      %1439 = vmatpush1.bf16.msra.mxu0 %v1061
      %1440 = vmatprep.subr.bf16.mxu0 0
      %1441 = vmatpush1.bf16.msra.mxu0 %v1062
      %1442 = vmatprep.subr.bf16.mxu0 0
      %1443 = vmatpush1.bf16.msra.mxu0 %v1063
      %1444 = vmatprep.subr.bf16.mxu0 0
      %1445 = vmatpush1.bf16.msra.mxu0 %v1064
      %1446 = vmatprep.subr.bf16.mxu0 0
      %1447 = vmatpush1.bf16.msra.mxu0 %v1065
      %1448 = vmatprep.subr.bf16.mxu0 0
      %1449 = vmatpush1.bf16.msra.mxu0 %v1066
      %1450 = vmatprep.subr.bf16.mxu0 0
      %1451 = vmatpush1.bf16.msra.mxu0 %v1067
      %1452 = vmatprep.subr.bf16.mxu0 0
      %1453 = vmatpush1.bf16.msra.mxu0 %v1068
      %1454 = vmatprep.subr.bf16.mxu0 0
      %1455 = vmatpush1.bf16.msra.mxu0 %v1069
      %1456 = vmatprep.subr.bf16.mxu0 0
      %1457 = vmatpush1.bf16.msra.mxu0 %v1070
      %1458 = vmatprep.subr.bf16.mxu0 0
      %1459 = vmatpush1.bf16.msra.mxu0 %v1071
      %1460 = vmatprep.subr.bf16.mxu0 0
      %1461 = vmatpush1.bf16.msra.mxu0 %v1072
      %1462 = vmatprep.subr.bf16.mxu0 0
      %1463 = vmatpush1.bf16.msra.mxu0 %v1073
      %1464 = vmatprep.subr.bf16.mxu0 0
      %1465 = vmatpush1.bf16.msra.mxu0 %v1074
      %1466 = vmatprep.subr.bf16.mxu0 0
      %1467 = vmatpush1.bf16.msra.mxu0 %v1075
      %1468 = vmatprep.mubr.bf16.mxu0 %v447
      %1469 = vmatmul.mubr.bf16.gmra.mrb[0].mxu0 %v446
      %v1470 = vpop.f32.mrb[0].mxu0
      %v1471 = vadd.f32 %v1431, %v1470
      %v1472 = vpop.f32.mrb[0].mxu0
      %v1473 = vpop.f32.mrb[0].mxu0
      %v1474 = vpop.f32.mrb[0].mxu0
      %1475 = vdwg.mxu0
      %1476 = vmatprep.subr.bf16.mxu0 0
      %1477 = vmatpush1.bf16.msra.mxu0 %v1076
      %1478 = vmatprep.subr.bf16.mxu0 0
      %1479 = vmatpush1.bf16.msra.mxu0 %v1077
      %1480 = vmatprep.subr.bf16.mxu0 0
      %1481 = vmatpush1.bf16.msra.mxu0 %v1078
      %1482 = vmatprep.subr.bf16.mxu0 0
      %1483 = vmatpush1.bf16.msra.mxu0 %v1079
      %1484 = vmatprep.subr.bf16.mxu0 0
      %1485 = vmatpush1.bf16.msra.mxu0 %v1080
      %1486 = vmatprep.subr.bf16.mxu0 0
      %1487 = vmatpush1.bf16.msra.mxu0 %v1081
      %1488 = vmatprep.subr.bf16.mxu0 0
      %1489 = vmatpush1.bf16.msra.mxu0 %v1082
      %1490 = vmatprep.subr.bf16.mxu0 0
      %1491 = vmatpush1.bf16.msra.mxu0 %v1083
      %1492 = vmatprep.subr.bf16.mxu0 0
      %1493 = vmatpush1.bf16.msra.mxu0 %v1084
      %1494 = vmatprep.subr.bf16.mxu0 0
      %1495 = vmatpush1.bf16.msra.mxu0 %v1085
      %1496 = vmatprep.subr.bf16.mxu0 0
      %1497 = vmatpush1.bf16.msra.mxu0 %v1086
      %1498 = vmatprep.subr.bf16.mxu0 0
      %1499 = vmatpush1.bf16.msra.mxu0 %v1087
      %1500 = vmatprep.subr.bf16.mxu0 0
      %1501 = vmatpush1.bf16.msra.mxu0 %v1088
      %1502 = vmatprep.subr.bf16.mxu0 0
      %1503 = vmatpush1.bf16.msra.mxu0 %v1089
      %1504 = vmatprep.subr.bf16.mxu0 0
      %1505 = vmatpush1.bf16.msra.mxu0 %v1090
      %1506 = vmatprep.subr.bf16.mxu0 0
      %1507 = vmatpush1.bf16.msra.mxu0 %v1091
      %1508 = vmatprep.mubr.bf16.mxu0 %v449
      %1509 = vmatmul.mubr.bf16.gmra.mrb[0].mxu0 %v448
      %v1510 = vpop.f32.mrb[0].mxu0
      %v1511 = vadd.f32 %v1471, %v1510
      %v1512 = vpop.f32.mrb[0].mxu0
      %v1513 = vpop.f32.mrb[0].mxu0
      %v1514 = vpop.f32.mrb[0].mxu0
      %1515 = vdwg.mxu0
      %1516 = vmatprep.subr.bf16.mxu0 0
      %1517 = vmatpush1.bf16.msra.mxu0 %v1092
      %1518 = vmatprep.subr.bf16.mxu0 0
      %1519 = vmatpush1.bf16.msra.mxu0 %v1093
      %1520 = vmatprep.subr.bf16.mxu0 0
      %1521 = vmatpush1.bf16.msra.mxu0 %v1094
      %1522 = vmatprep.subr.bf16.mxu0 0
      %1523 = vmatpush1.bf16.msra.mxu0 %v1095
      %1524 = vmatprep.subr.bf16.mxu0 0
      %1525 = vmatpush1.bf16.msra.mxu0 %v1096
      %1526 = vmatprep.subr.bf16.mxu0 0
      %1527 = vmatpush1.bf16.msra.mxu0 %v1097
      %1528 = vmatprep.subr.bf16.mxu0 0
      %1529 = vmatpush1.bf16.msra.mxu0 %v1098
      %1530 = vmatprep.subr.bf16.mxu0 0
      %1531 = vmatpush1.bf16.msra.mxu0 %v1099
      %1532 = vmatprep.subr.bf16.mxu0 0
      %1533 = vmatpush1.bf16.msra.mxu0 %v1100
      %1534 = vmatprep.subr.bf16.mxu0 0
      %1535 = vmatpush1.bf16.msra.mxu0 %v1101
      %1536 = vmatprep.subr.bf16.mxu0 0
      %1537 = vmatpush1.bf16.msra.mxu0 %v1102
      %1538 = vmatprep.subr.bf16.mxu0 0
      %1539 = vmatpush1.bf16.msra.mxu0 %v1103
      %1540 = vmatprep.subr.bf16.mxu0 0
      %1541 = vmatpush1.bf16.msra.mxu0 %v1104
      %1542 = vmatprep.subr.bf16.mxu0 0
      %1543 = vmatpush1.bf16.msra.mxu0 %v1105
      %1544 = vmatprep.subr.bf16.mxu0 0
      %1545 = vmatpush1.bf16.msra.mxu0 %v1106
      %1546 = vmatprep.subr.bf16.mxu0 0
      %1547 = vmatpush1.bf16.msra.mxu0 %v1107
      %1548 = vmatprep.mubr.bf16.mxu0 %v451
      %1549 = vmatmul.mubr.bf16.gmra.mrb[0].mxu0 %v450
      %v1550 = vpop.f32.mrb[0].mxu0
      %v1551 = vadd.f32 %v1511, %v1550
      %v1552 = vpop.f32.mrb[0].mxu0
      %v1553 = vpop.f32.mrb[0].mxu0
      %v1554 = vpop.f32.mrb[0].mxu0
      %1555 = vdwg.mxu0
      %1556 = vst.msk [vmem:[#allocation3] sm:$0xff] %vm135, %v140
      %1558 = vrot.lane.b32.xlu0 %v1551, 32
      %v1559 = vpop.permute.xlu0 %1558
      %vm1561 = vcmask 523520
      %1562 = vst.msk [vmem:[#allocation3] sm:$0xff] %vm1561, %v1559
      %v1563 = vpack.c.bf16 %v140, %v140
      %v1564 = vld [vmem:[%s5] sm:$0xf]
      %v1565 = vld [vmem:[%s5 + $0x4] sm:$0xf]
      %v1566 = vld [vmem:[%s5 + $0x8] sm:$0xf]
      %v1567 = vld [vmem:[%s5 + $0xc] sm:$0xf]
      %v1568 = vpack.c.bf16 %v1551, %v1551
      %v1569 = vld [vmem:[%s6] sm:$0xf]
      %v1570 = vld [vmem:[%s6 + $0x4] sm:$0xf]
      %v1571 = vld [vmem:[%s6 + $0x8] sm:$0xf]
      %v1572 = vld [vmem:[%s6 + $0xc] sm:$0xf]
      %v1577 = vunpack.c.l.b16 %v1569
      %v1578 = vunpack.c.l.b16 %v1570
      %v1579 = vunpack.c.l.b16 %v1571
      %v1580 = vunpack.c.l.b16 %v1572
      %v1581 = vpack.c.b16 %v1578, %v1577
      %v1582 = vpack.c.b16 %v1580, %v1579
      %v1586 = vsel %vm135, %v1568, 0
      %1588 = vmatprep.subr.bf16.mxu0 0
      %1589 = vmatpush1.bf16.msra.mxu0 %v1581
      %1590 = vmatprep.subr.bf16.mxu0 0
      %1591 = vmatpush1.bf16.msra.mxu0 %v1582
      %1592 = vmatprep.subr.bf16.mxu0 0
      %1593 = vmatpush1.bf16.msra.mxu0 0
      %1594 = vmatprep.subr.bf16.mxu0 0
      %1595 = vmatpush1.bf16.msra.mxu0 0
      %1596 = vmatprep.subr.bf16.mxu0 0
      %1597 = vmatpush1.bf16.msra.mxu0 0
      %1598 = vmatprep.subr.bf16.mxu0 0
      %1599 = vmatpush1.bf16.msra.mxu0 0
      %1600 = vmatprep.subr.bf16.mxu0 0
      %1601 = vmatpush1.bf16.msra.mxu0 0
      %1602 = vmatprep.subr.bf16.mxu0 0
      %1603 = vmatpush1.bf16.msra.mxu0 0
      %1604 = vmatprep.subr.bf16.mxu0 0
      %1605 = vmatpush1.bf16.msra.mxu0 0
      %1606 = vmatprep.subr.bf16.mxu0 0
      %1607 = vmatpush1.bf16.msra.mxu0 0
      %1608 = vmatprep.subr.bf16.mxu0 0
      %1609 = vmatpush1.bf16.msra.mxu0 0
      %1610 = vmatprep.subr.bf16.mxu0 0
      %1611 = vmatpush1.bf16.msra.mxu0 0
      %1612 = vmatprep.subr.bf16.mxu0 0
      %1613 = vmatpush1.bf16.msra.mxu0 0
      %1614 = vmatprep.subr.bf16.mxu0 0
      %1615 = vmatpush1.bf16.msra.mxu0 0
      %1616 = vmatprep.subr.bf16.mxu0 0
      %1617 = vmatpush1.bf16.msra.mxu0 0
      %1618 = vmatprep.subr.bf16.mxu0 0
      %1619 = vmatpush1.bf16.msra.mxu0 0
      %1620 = vmatprep.mubr.bf16.mxu0 0
      %1621 = vmatmul.mubr.bf16.gmra.mrb[0].mxu0 %v1586
      %v1622 = vpop.f32.mrb[0].mxu0
      %v1623 = vadd.f32 0.0, %v1622
      %v1624 = vpop.f32.mrb[0].mxu0
      %v1625 = vpop.f32.mrb[0].mxu0
      %v1626 = vpop.f32.mrb[0].mxu0
      %1627 = vdwg.mxu0
      %v1632 = vunpack.c.l.b16 %v1564
      %v1633 = vunpack.c.l.b16 %v1565
      %v1634 = vunpack.c.l.b16 %v1566
      %v1635 = vunpack.c.l.b16 %v1567
      %v1636 = vpack.c.b16 %v1633, %v1632
      %v1637 = vpack.c.b16 %v1635, %v1634
      %v1641 = vsel %vm135, %v1563, 0
      %1643 = vmatprep.subr.bf16.mxu0 0
      %1644 = vmatpush1.bf16.msra.mxu0 %v1636
      %1645 = vmatprep.subr.bf16.mxu0 0
      %1646 = vmatpush1.bf16.msra.mxu0 %v1637
      %1647 = vmatprep.subr.bf16.mxu0 0
      %1648 = vmatpush1.bf16.msra.mxu0 0
      %1649 = vmatprep.subr.bf16.mxu0 0
      %1650 = vmatpush1.bf16.msra.mxu0 0
      %1651 = vmatprep.subr.bf16.mxu0 0
      %1652 = vmatpush1.bf16.msra.mxu0 0
      %1653 = vmatprep.subr.bf16.mxu0 0
      %1654 = vmatpush1.bf16.msra.mxu0 0
      %1655 = vmatprep.subr.bf16.mxu0 0
      %1656 = vmatpush1.bf16.msra.mxu0 0
      %1657 = vmatprep.subr.bf16.mxu0 0
      %1658 = vmatpush1.bf16.msra.mxu0 0
      %1659 = vmatprep.subr.bf16.mxu0 0
      %1660 = vmatpush1.bf16.msra.mxu0 0
      %1661 = vmatprep.subr.bf16.mxu0 0
      %1662 = vmatpush1.bf16.msra.mxu0 0
      %1663 = vmatprep.subr.bf16.mxu0 0
      %1664 = vmatpush1.bf16.msra.mxu0 0
      %1665 = vmatprep.subr.bf16.mxu0 0
      %1666 = vmatpush1.bf16.msra.mxu0 0
      %1667 = vmatprep.subr.bf16.mxu0 0
      %1668 = vmatpush1.bf16.msra.mxu0 0
      %1669 = vmatprep.subr.bf16.mxu0 0
      %1670 = vmatpush1.bf16.msra.mxu0 0
      %1671 = vmatprep.subr.bf16.mxu0 0
      %1672 = vmatpush1.bf16.msra.mxu0 0
      %1673 = vmatprep.subr.bf16.mxu0 0
      %1674 = vmatpush1.bf16.msra.mxu0 0
      %1675 = vmatprep.mubr.bf16.mxu0 0
      %1676 = vmatmul.mubr.bf16.gmra.mrb[0].mxu0 %v1641
      %v1677 = vpop.f32.mrb[0].mxu0
      %v1678 = vadd.f32 %v1623, %v1677
      %v1679 = vpop.f32.mrb[0].mxu0
      %v1680 = vpop.f32.mrb[0].mxu0
      %v1681 = vpop.f32.mrb[0].mxu0
      %1682 = vdwg.mxu0
      %v1683 = vld [vmem:[%s7] sm:$0x1]
      %v1685 = vlaneseq
      %v1686 = vshrl.u32 %v1685, 7
      %v1687 = vsub.s32 0, %v1686
      %v1688 = vrot.slane %v1683, %v1687
      %v1690 = vadd.f32 %v1678, %v1688
      %v1691 = vmax.f32 %v1690, 0.0
      %v1692 = vpack.c.bf16 %v1691, %v1691
      %v1693 = vld [vmem:[%s8] sm:$0xf]
      %v1694 = vld [vmem:[%s8 + $0x4] sm:$0xf]
      %v1695 = vld [vmem:[%s8 + $0x8] sm:$0xf]
      %v1696 = vld [vmem:[%s8 + $0xc] sm:$0xf]
      %v1697 = vld [vmem:[%s8 + $0x10] sm:$0xf]
      %v1698 = vld [vmem:[%s8 + $0x14] sm:$0xf]
      %v1699 = vld [vmem:[%s8 + $0x18] sm:$0xf]
      %v1700 = vld [vmem:[%s8 + $0x1c] sm:$0xf]
      %v1701 = vld [vmem:[%s9] sm:$0x1]
      %v1703 = vlaneseq
      %v1704 = vshrl.u32 %v1703, 7
      %v1705 = vsub.s32 0, %v1704
      %v1706 = vrot.slane %v1701, %v1705
      %v1716 = vunpack.c.l.b16 %v1693
      %v1717 = vunpack.c.l.b16 %v1694
      %v1718 = vunpack.c.l.b16 %v1695
      %v1719 = vunpack.c.l.b16 %v1696
      %v1720 = vunpack.c.l.b16 %v1697
      %v1721 = vunpack.c.l.b16 %v1698
      %v1722 = vunpack.c.l.b16 %v1699
      %v1723 = vunpack.c.l.b16 %v1700
      %v1724 = vpack.c.b16 %v1717, %v1716
      %v1725 = vpack.c.b16 %v1719, %v1718
      %v1726 = vpack.c.b16 %v1721, %v1720
      %v1727 = vpack.c.b16 %v1723, %v1722
      %v1733 = vsel %vm90, %v1692, 0
      %1735 = vmatprep.subr.bf16.mxu0 0
      %1736 = vmatpush1.bf16.msra.mxu0 %v1724
      %1737 = vmatprep.subr.bf16.mxu0 0
      %1738 = vmatpush1.bf16.msra.mxu0 %v1725
      %1739 = vmatprep.subr.bf16.mxu0 0
      %1740 = vmatpush1.bf16.msra.mxu0 %v1726
      %1741 = vmatprep.subr.bf16.mxu0 0
      %1742 = vmatpush1.bf16.msra.mxu0 %v1727
      %1743 = vmatprep.subr.bf16.mxu0 0
      %1744 = vmatpush1.bf16.msra.mxu0 0
      %1745 = vmatprep.subr.bf16.mxu0 0
      %1746 = vmatpush1.bf16.msra.mxu0 0
      %1747 = vmatprep.subr.bf16.mxu0 0
      %1748 = vmatpush1.bf16.msra.mxu0 0
      %1749 = vmatprep.subr.bf16.mxu0 0
      %1750 = vmatpush1.bf16.msra.mxu0 0
      %1751 = vmatprep.subr.bf16.mxu0 0
      %1752 = vmatpush1.bf16.msra.mxu0 0
      %1753 = vmatprep.subr.bf16.mxu0 0
      %1754 = vmatpush1.bf16.msra.mxu0 0
      %1755 = vmatprep.subr.bf16.mxu0 0
      %1756 = vmatpush1.bf16.msra.mxu0 0
      %1757 = vmatprep.subr.bf16.mxu0 0
      %1758 = vmatpush1.bf16.msra.mxu0 0
      %1759 = vmatprep.subr.bf16.mxu0 0
      %1760 = vmatpush1.bf16.msra.mxu0 0
      %1761 = vmatprep.subr.bf16.mxu0 0
      %1762 = vmatpush1.bf16.msra.mxu0 0
      %1763 = vmatprep.subr.bf16.mxu0 0
      %1764 = vmatpush1.bf16.msra.mxu0 0
      %1765 = vmatprep.subr.bf16.mxu0 0
      %1766 = vmatpush1.bf16.msra.mxu0 0
      %1767 = vmatprep.mubr.bf16.mxu0 0
      %1768 = vmatmul.mubr.bf16.gmra.mrb[0].mxu0 %v1733
      %v1769 = vpop.f32.mrb[0].mxu0
      %v1770 = vadd.f32 %v1706, %v1769
      %v1771 = vpop.f32.mrb[0].mxu0
      %v1772 = vpop.f32.mrb[0].mxu0
      %v1773 = vpop.f32.mrb[0].mxu0
      %1774 = vdwg.mxu0
      %1775 = vst [vmem:[#allocation5] sm:$0xff] %v1770
    $region49: #{tpu_custom_call.1} parent=1 // pred_fallthru
      _
    // Predicated region
    $region50: #{tpu_custom_call.1} parent=1 // pred_check
      _
    $region51: #{tpu_custom_call.1} parent=1 // pred_check_branch
      %1777 = sbr.rel (0) target = $region53
    $region52: #{tpu_custom_call.1} parent=1 // pred_region
      %s1779 = ssub.s32 128, 128
      %1780 = vsyncadd [#allocation4], %s1779
      %s1782 = sshll.u32 [#allocation3], 4
      %s1783 = int_to_ptr.vmem [resolvable:$true] %s1782
      %1785 = dma.vmem_to_hbm [thread:$0]  %s1783, 128, %s10, [#allocation4]
    $region53: #{tpu_custom_call.1} parent=1 // pred_fallthru
      _
    // Predicated region
    $region54: #{tpu_custom_call.1} parent=1 // pred_check
      _
    $region55: #{tpu_custom_call.1} parent=1 // pred_check_branch
      %1787 = sbr.rel (0) target = $region57
    $region56: #{tpu_custom_call.1} parent=1 // pred_region
      %s1789 = ssub.s32 128, 128
      %1790 = vsyncadd [#allocation6], %s1789
      %s1792 = sshll.u32 [#allocation5], 4
      %s1793 = int_to_ptr.vmem [resolvable:$true] %s1792
      %1795 = dma.vmem_to_hbm [thread:$0]  %s1793, 128, %s11, [#allocation6]
    $region57: #{tpu_custom_call.1} parent=1 // pred_fallthru
      _
    // Predicated region
    $region58: #{tpu_custom_call.1} parent=1 // pred_check
      _
    $region59: #{tpu_custom_call.1} parent=1 // pred_check_branch
      %1797 = sbr.rel (0) target = $region61
    $region60: #{tpu_custom_call.1} parent=1 // pred_region
      %1798 = dma.done [#allocation4], 128
    $region61: #{tpu_custom_call.1} parent=1 // pred_fallthru
      _
    // Predicated region
    $region62: #{tpu_custom_call.1} parent=1 // pred_check
      _
    $region63: #{tpu_custom_call.1} parent=1 // pred_check_branch
      %1800 = sbr.rel (0) target = $region65
    $region64: #{tpu_custom_call.1} parent=1 // pred_region
      %1801 = dma.done [#allocation6], 128
    $region65: #{tpu_custom_call.1} parent=1 // pred_fallthru
      _
    %1802 = vsyncpa [#allocation4], 1
    %1803 = vsyncpa [#allocation6], 1

</llo_original>
